<compile_context>
chip_gen: v7x
topology: tpu7x:2x2x1
jax: 0.10.0
libtpu: 0.0.40
codegen_flags: <defaults>
</compile_context>

<pallas_src>
import math
import jax
import jax.numpy as jnp
from jax.experimental import pallas as pl
from jax.experimental.pallas import tpu as pltpu


def _rup(n, m=128):
    return ((n + m - 1) // m) * m


def make_kernel(B, S, P, HP, hd, SB, SBP, FP):
    """All weights arrive pre-transposed, zero-padded to lane-dense shapes and
    (where they feed a matmul) pre-cast to bf16, so every matmul is a bf16
    `x @ W` with f32 accumulation followed by an f32 bias add."""
    HS = HP * S
    scale = 1.0 / math.sqrt(hd)
    inv_S = 1.0 / S                        # compile-time constant: no runtime div

    def kernel(xcol_ref, wc_ref, bc_ref, wqkv_ref, bqkv_ref, mask_ref,
               wo_ref, bo_ref, w1_ref, b1_ref, w2_ref, b2_ref, out_ref):
        # ---- Conv1d (im2col) + ReLU: one (P*SBP, KEP) @ (KEP, FP) bf16 matmul -
        conv = jnp.maximum(
            jnp.dot(xcol_ref[...], wc_ref[...],
                    preferred_element_type=jnp.float32) + bc_ref[...], 0.0)

        # ---- MaxPool1d(K): P elementwise maxes over sublane-8-aligned chunks -
        pooled = conv[0:SBP, :]
        for p in range(1, P):
            pooled = jnp.maximum(pooled, conv[p * SBP:(p + 1) * SBP, :])
        if SBP != SB:
            pooled = pooled[0:SB, :]            # drop inert zero-pad rows (once)

        # ---- Fused Q|K|V projection: one (SB, FP) @ (FP, 3*FP) bf16 matmul ---
        qkv = jnp.dot(pooled.astype(jnp.bfloat16), wqkv_ref[...],
                      preferred_element_type=jnp.float32) + bqkv_ref[...]
        q3 = qkv[:, 0:FP].reshape(S, B, FP)          # 128-lane-dense slices
        k3 = qkv[:, FP:2 * FP].reshape(S, B, FP)
        v3 = qkv[:, 2 * FP:3 * FP].reshape(S, B, FP)

        # ---- MultiheadAttention (batch_first=False: seq axis = B, batch = S).
        # ALL heads in one batched einsum pair + one softmax.  mask_ref zeros
        # every lane not belonging to head h in batch row n = h*S + s, so the
        # full-128-lane contraction yields the per-head score, and summing the
        # masked contexts over heads reconstitutes the concatenated output.
        mask = mask_ref[...]                                             # (HS,1,FP)
        qh = jnp.broadcast_to(q3[None], (HP, S, B, FP)).reshape(HS, B, FP)
        kh = jnp.broadcast_to(k3[None], (HP, S, B, FP)).reshape(HS, B, FP) * mask
        vh = jnp.broadcast_to(v3[None], (HP, S, B, FP)).reshape(HS, B, FP) * mask

        sc = jnp.einsum("nbf,ncf->nbc", qh.astype(jnp.bfloat16),
                        kh.astype(jnp.bfloat16),
                        preferred_element_type=jnp.float32) * scale     # (HS,B,B)
        sc = sc - jnp.max(sc, axis=-1, keepdims=True)
        e = jnp.exp(sc)
        pr = e * pl.reciprocal(jnp.sum(e, axis=-1, keepdims=True), approx=True)
        ctx = jnp.einsum("nbc,ncf->nbf", pr.astype(jnp.bfloat16),
                         vh.astype(jnp.bfloat16),
                         preferred_element_type=jnp.float32)             # (HS,B,FP)
        # Sum over (head, s): masked lanes -> head concat; torch.mean over S
        # commutes with the affine out_proj.  Lane-dense (B, FP), pad lanes = 0.
        ctx_mean = jnp.sum(ctx, axis=0) * inv_S                          # (B, FP)

        fv = jnp.dot(ctx_mean.astype(jnp.bfloat16), wo_ref[...],
                     preferred_element_type=jnp.float32) + bo_ref[...]   # (B, FP)

        # Dropouts = identity (eval).  Fused fc2_emotion|fc2_feature heads.
        h1 = jnp.maximum(
            jnp.dot(fv.astype(jnp.bfloat16), w1_ref[...],
                    preferred_element_type=jnp.float32) + b1_ref[...], 0.0)
        out_ref[...] = jnp.dot(h1.astype(jnp.bfloat16), w2_ref[...],
                               preferred_element_type=jnp.float32) + b2_ref[...]

    return kernel


def forward_pallas(params, text, features, cfg):
    E, K, F = cfg["embed_dim"], cfg["kernel_size"], cfg["num_filters"]
    H, C1, C2 = cfg["attn_heads"], cfg["num_classes"], cfg["feature_classes"]

    # Glue in plain JAX: embedding gathers + concat (no in-kernel gather needed).
    emb = params["embedding"][text]                               # (B, L, E)
    fe = params["feature_embedding"][features][:, None, :]        # (B, 1, E)
    x = jnp.concatenate([emb, fe], axis=1).astype(jnp.float32)    # (B, T, E)
    B, T, _ = x.shape

    Lout = T - K + 1                      # Conv1d 'valid' output length
    P = K                                 # MaxPool1d(kernel): window = stride = K
    S = (Lout - P) // P + 1               # pooled length
    SP = S * P
    KE = K * E
    SB = S * B
    SBP = _rup(SB, 8)                     # sublane-8 aligned pool-chunk rows

    # Lane-dense (padded) dims.
    KEP, FP, EP = _rup(KE), _rup(F), _rup(E)
    C = C1 + C2
    CP = _rup(C)
    hd = F // H
    HP = FP // hd                         # padded head count (extra heads inert)

    # ---- im2col, row order (p, s, b), each p-chunk zero-padded to SBP rows ---
    xw = jnp.concatenate([x[:, k:k + SP, :] for k in range(K)], axis=-1)  # (B,SP,KE)
    xcol = xw.reshape(B, S, P, KE).transpose(2, 1, 0, 3).reshape(P, SB, KE)
    xcol = jnp.pad(xcol, ((0, 0), (0, SBP - SB), (0, KEP - KE)))
    xcol = xcol.reshape(P * SBP, KEP).astype(jnp.bfloat16)

    # ---- weights: pre-transpose, fuse, zero-pad lane-dense, bf16 at MXU edge --
    wc = jnp.transpose(params["conv_w"], (2, 1, 0)).reshape(KE, F)        # (KE,F)
    wc = jnp.pad(wc, ((0, KEP - KE), (0, FP - F))).astype(jnp.bfloat16)
    bc = jnp.pad(params["conv_b"][None, :], ((0, 0), (0, FP - F)))        # f32

    Wq, Wk, Wv = jnp.split(params["in_proj_w"], 3, axis=0)
    bq, bk, bv = jnp.split(params["in_proj_b"], 3, axis=0)
    padw = lambda w: jnp.pad(w, ((0, FP - w.shape[0]), (0, FP - w.shape[1])))
    padb = lambda b: jnp.pad(b[None, :], ((0, 0), (0, FP - b.shape[0])))
    wqkv = jnp.concatenate([padw(Wq.T), padw(Wk.T), padw(Wv.T)],
                           axis=1).astype(jnp.bfloat16)                   # (FP,3FP)
    bqkv = jnp.concatenate([padb(bq), padb(bk), padb(bv)], axis=1)        # (1,3FP) f32

    # Per-head lane mask, expanded so batch row n = h*S + s selects head h.
    headmask = (jnp.arange(FP)[None, :] // hd ==
                jnp.arange(HP)[:, None]).astype(jnp.float32)              # (HP, FP)
    maskexp = jnp.repeat(headmask, S, axis=0)[:, None, :]                 # (HP*S,1,FP)

    wo = jnp.pad(params["out_proj_w"].T,
                 ((0, FP - F), (0, FP - F))).astype(jnp.bfloat16)         # (FP,FP)
    bo = padb(params["out_proj_b"])                                       # f32
    w1 = jnp.pad(params["fc1_w"].T,
                 ((0, FP - F), (0, EP - E))).astype(jnp.bfloat16)         # (FP,EP)
    b1 = jnp.pad(params["fc1_b"][None, :], ((0, 0), (0, EP - E)))         # f32
    w2 = jnp.pad(jnp.concatenate([params["fc2e_w"].T, params["fc2f_w"].T], axis=1),
                 ((0, EP - E), (0, CP - C))).astype(jnp.bfloat16)         # (EP,CP)
    b2 = jnp.pad(jnp.concatenate([params["fc2e_b"], params["fc2f_b"]])[None, :],
                 ((0, 0), (0, CP - C)))                                   # f32

    inputs = [xcol, wc, bc, wqkv, bqkv, maskexp, wo, bo, w1, b1, w2, b2]

    HS = HP * S
    flops = 2 * (P * SBP * KEP * FP        # conv matmul
                 + SB * FP * 3 * FP        # fused qkv
                 + 2 * HS * B * B * FP     # batched scores + p@v
                 + B * FP * FP             # out_proj
                 + B * FP * EP             # fc1
                 + B * EP * CP)            # fused fc2 heads
    transcendentals = HS * B * (B + 1)     # exps + reciprocals
    bytes_accessed = (sum(int(a.size) * a.dtype.itemsize for a in inputs)
                      + B * CP * 4)

    kernel = make_kernel(B=B, S=S, P=P, HP=HP, hd=hd, SB=SB, SBP=SBP, FP=FP)
    # Gridless / all-VMEM-resident is fine at these sizes (few hundred KiB).
    out = pl.pallas_call(
        kernel,
        out_shape=jax.ShapeDtypeStruct((B, CP), jnp.float32),
        in_specs=[pl.BlockSpec(memory_space=pltpu.MemorySpace.VMEM)] * len(inputs),
        out_specs=pl.BlockSpec(memory_space=pltpu.MemorySpace.VMEM),
        cost_estimate=pl.CostEstimate(flops=int(flops),
                                      transcendentals=int(transcendentals),
                                      bytes_accessed=int(bytes_accessed)),
    )(*inputs)
    return out[:, :C1], out[:, C1:C1 + C2]


def reference_forward(params, text, features, cfg):
    """Pure-JAX reference mirroring the PyTorch forward (eval mode)."""
    E, K, F, H = cfg["embed_dim"], cfg["kernel_size"], cfg["num_filters"], cfg["attn_heads"]
    emb = params["embedding"][text]
    fe = params["feature_embedding"][features][:, None, :]
    x = jnp.concatenate([emb, fe], axis=1)                        # (B, T, E)
    B, T, _ = x.shape
    Lout = T - K + 1
    conv = jnp.zeros((B, Lout, F), jnp.float32)
    for k in range(K):
        conv = conv + jnp.einsum("ble,fe->blf", x[:, k:k + Lout, :],
                                 params["conv_w"][:, :, k])
    conv = jax.nn.relu(conv + params["conv_b"])
    P = K
    S = (Lout - P) // P + 1
    pooled = conv[:, :S * P, :].reshape(B, S, P, F).max(axis=2)   # (B, S, F)
    Wq, Wk, Wv = jnp.split(params["in_proj_w"], 3, axis=0)
    bq, bk, bv = jnp.split(params["in_proj_b"], 3, axis=0)
    q = pooled @ Wq.T + bq
    kk = pooled @ Wk.T + bk
    v = pooled @ Wv.T + bv
    hd = F // H
    q = q.reshape(B, S, H, hd)
    kk = kk.reshape(B, S, H, hd)
    v = v.reshape(B, S, H, hd)
    sc = jnp.einsum("tnhd,snhd->nhts", q, kk) / math.sqrt(hd)
    p = jax.nn.softmax(sc, axis=-1)
    ctx = jnp.einsum("nhts,snhd->tnhd", p, v).reshape(B, S, F)
    attn = ctx @ params["out_proj_w"].T + params["out_proj_b"]
    fv = attn.mean(axis=1)
    h1 = jax.nn.relu(fv @ params["fc1_w"].T + params["fc1_b"])
    emo = h1 @ params["fc2e_w"].T + params["fc2e_b"]
    feat = h1 @ params["fc2f_w"].T + params["fc2f_b"]
    return emo, feat


def init_params(key, cfg):
    V, FS, E = cfg["vocab_size"], cfg["feature_size"], cfg["embed_dim"]
    C1, C2 = cfg["num_classes"], cfg["feature_classes"]
    K, F = cfg["kernel_size"], cfg["num_filters"]
    ks = jax.random.split(key, 14)

    def nrm(k, shape, scale=0.1):
        return scale * jax.random.normal(k, shape, dtype=jnp.float32)

    return {
        "embedding": nrm(ks[0], (V, E)),
        "feature_embedding": nrm(ks[1], (FS, E)),
        "conv_w": nrm(ks[2], (F, E, K)),
        "conv_b": nrm(ks[3], (F,)),
        "in_proj_w": nrm(ks[4], (3 * F, F)),
        "in_proj_b": nrm(ks[5], (3 * F,)),
        "out_proj_w": nrm(ks[6], (F, F)),
        "out_proj_b": nrm(ks[7], (F,)),
        "fc1_w": nrm(ks[8], (E, F)),
        "fc1_b": nrm(ks[9], (E,)),
        "fc2e_w": nrm(ks[10], (C1, E)),
        "fc2e_b": nrm(ks[11], (C1,)),
        "fc2f_w": nrm(ks[12], (C2, E)),
        "fc2f_b": nrm(ks[13], (C2,)),
    }


if __name__ == "__main__":
    cfg = dict(vocab_size=100, feature_size=10, embed_dim=32, attn_heads=4,
               num_classes=5, feature_classes=3, kernel_size=3, num_filters=64)
    B, L = 2, 8
    key = jax.random.PRNGKey(0)
    kp, kt, kf = jax.random.split(key, 3)
    params = init_params(kp, cfg)
    text = jax.random.randint(kt, (B, L), 0, cfg["vocab_size"], dtype=jnp.int32)
    features = jax.random.randint(kf, (B,), 0, cfg["feature_size"], dtype=jnp.int32)

    # Single jit over the whole wrapper (gathers, im2col, pads, pallas_call):
    # at these sizes per-op dispatch dominates, so fuse it all.
    fwd = jax.jit(lambda p, t, f: forward_pallas(p, t, f, cfg))
    emo, feat = fwd(params, text, features)
    jax.block_until_ready((emo, feat))

    emo_ref, feat_ref = reference_forward(params, text, features, cfg)
    assert emo.shape == (B, cfg["num_classes"]) and feat.shape == (B, cfg["feature_classes"])
    # bf16 matmul operands (f32 accumulation) + approx EUP reciprocal in the
    # softmax bound accuracy to ~1% relative, hence 2e-2 tolerance.
    assert jnp.allclose(emo, emo_ref, rtol=2e-2, atol=2e-2), float(jnp.max(jnp.abs(emo - emo_ref)))
    assert jnp.allclose(feat, feat_ref, rtol=2e-2, atol=2e-2), float(jnp.max(jnp.abs(feat - feat_ref)))
    print("KERNEL_OK")
</pallas_src>

<mosaic_0001>
module attributes {stable_mosaic.version = 11 : i64} {
  func.func @kernel(%arg0: memref<24x128xbf16, #tpu.memory_space<vmem>>, %arg1: memref<128x128xbf16, #tpu.memory_space<vmem>>, %arg2: memref<1x128xf32, #tpu.memory_space<vmem>>, %arg3: memref<128x384xbf16, #tpu.memory_space<vmem>>, %arg4: memref<1x384xf32, #tpu.memory_space<vmem>>, %arg5: memref<16x1x128xf32, #tpu.memory_space<vmem>>, %arg6: memref<128x128xbf16, #tpu.memory_space<vmem>>, %arg7: memref<1x128xf32, #tpu.memory_space<vmem>>, %arg8: memref<128x128xbf16, #tpu.memory_space<vmem>>, %arg9: memref<1x128xf32, #tpu.memory_space<vmem>>, %arg10: memref<128x128xbf16, #tpu.memory_space<vmem>>, %arg11: memref<1x128xf32, #tpu.memory_space<vmem>>, %arg12: memref<2x128xf32, #tpu.memory_space<vmem>>) attributes {dimension_semantics = [], scalar_prefetch = 0 : i64, scratch_operands = 0 : i64, tpu.core_type = #tpu.core_type<tc>} {
    %c0 = arith.constant 0 : index
    %c0_0 = arith.constant 0 : index
    %0 = vector.load %arg0[%c0, %c0_0] : memref<24x128xbf16, #tpu.memory_space<vmem>>, vector<24x128xbf16>
    %c0_1 = arith.constant 0 : index
    %c0_2 = arith.constant 0 : index
    %1 = vector.load %arg1[%c0_1, %c0_2] : memref<128x128xbf16, #tpu.memory_space<vmem>>, vector<128x128xbf16>
    %cst = arith.constant dense<0.000000e+00> : vector<24x128xf32>
    %2 = tpu.matmul %0, %1, %cst {dimension_numbers = #tpu.dot_dimension_numbers<[1], [0], [0], [1], [0, 0, 1, 1], [], []>} : vector<24x128xbf16>, vector<128x128xbf16>, vector<24x128xf32> -> vector<24x128xf32>
    %c0_3 = arith.constant 0 : index
    %c0_4 = arith.constant 0 : index
    %3 = vector.load %arg2[%c0_3, %c0_4] : memref<1x128xf32, #tpu.memory_space<vmem>>, vector<1x128xf32>
    %4 = vector.broadcast %3 : vector<1x128xf32> to vector<24x128xf32>
    %5 = arith.addf %2, %4 : vector<24x128xf32>
    %cst_5 = arith.constant 0.000000e+00 : f32
    %6 = vector.broadcast %cst_5 : f32 to vector<24x128xf32>
    %7 = arith.maximumf %5, %6 : vector<24x128xf32>
    %8 = vector.extract_strided_slice %7 {offsets = [0, 0], sizes = [8, 128], strides = [1, 1]} : vector<24x128xf32> to vector<8x128xf32>
    %9 = vector.extract_strided_slice %7 {offsets = [8, 0], sizes = [8, 128], strides = [1, 1]} : vector<24x128xf32> to vector<8x128xf32>
    %10 = arith.maximumf %8, %9 : vector<8x128xf32>
    %11 = vector.extract_strided_slice %7 {offsets = [16, 0], sizes = [8, 128], strides = [1, 1]} : vector<24x128xf32> to vector<8x128xf32>
    %12 = arith.maximumf %10, %11 : vector<8x128xf32>
    %13 = vector.extract_strided_slice %12 {offsets = [0, 0], sizes = [4, 128], strides = [1, 1]} : vector<8x128xf32> to vector<4x128xf32>
    %14 = arith.truncf %13 : vector<4x128xf32> to vector<4x128xbf16>
    %c0_6 = arith.constant 0 : index
    %c0_7 = arith.constant 0 : index
    %15 = vector.load %arg3[%c0_6, %c0_7] : memref<128x384xbf16, #tpu.memory_space<vmem>>, vector<128x384xbf16>
    %cst_8 = arith.constant dense<0.000000e+00> : vector<4x384xf32>
    %16 = tpu.matmul %14, %15, %cst_8 {dimension_numbers = #tpu.dot_dimension_numbers<[1], [0], [0], [1], [0, 0, 1, 1], [], []>} : vector<4x128xbf16>, vector<128x384xbf16>, vector<4x384xf32> -> vector<4x384xf32>
    %c0_9 = arith.constant 0 : index
    %c0_10 = arith.constant 0 : index
    %17 = vector.load %arg4[%c0_9, %c0_10] : memref<1x384xf32, #tpu.memory_space<vmem>>, vector<1x384xf32>
    %18 = vector.broadcast %17 : vector<1x384xf32> to vector<4x384xf32>
    %19 = arith.addf %16, %18 : vector<4x384xf32>
    %20 = vector.extract_strided_slice %19 {offsets = [0, 0], sizes = [4, 128], strides = [1, 1]} : vector<4x384xf32> to vector<4x128xf32>
    %21 = vector.shape_cast %20 : vector<4x128xf32> to vector<2x2x128xf32>
    %22 = vector.extract_strided_slice %19 {offsets = [0, 128], sizes = [4, 128], strides = [1, 1]} : vector<4x384xf32> to vector<4x128xf32>
    %23 = vector.shape_cast %22 : vector<4x128xf32> to vector<2x2x128xf32>
    %24 = vector.extract_strided_slice %19 {offsets = [0, 256], sizes = [4, 128], strides = [1, 1]} : vector<4x384xf32> to vector<4x128xf32>
    %25 = vector.shape_cast %24 : vector<4x128xf32> to vector<2x2x128xf32>
    %c0_11 = arith.constant 0 : index
    %c0_12 = arith.constant 0 : index
    %c0_13 = arith.constant 0 : index
    %26 = vector.load %arg5[%c0_11, %c0_12, %c0_13] : memref<16x1x128xf32, #tpu.memory_space<vmem>>, vector<16x1x128xf32>
    %27 = vector.shape_cast %21 : vector<2x2x128xf32> to vector<1x2x2x128xf32>
    %28 = vector.shape_cast %27 : vector<1x2x2x128xf32> to vector<1x2x2x128xf32>
    %29 = vector.broadcast %28 : vector<1x2x2x128xf32> to vector<8x2x2x128xf32>
    %30 = vector.shape_cast %29 : vector<8x2x2x128xf32> to vector<16x2x128xf32>
    %31 = vector.shape_cast %23 : vector<2x2x128xf32> to vector<1x2x2x128xf32>
    %32 = vector.shape_cast %31 : vector<1x2x2x128xf32> to vector<1x2x2x128xf32>
    %33 = vector.broadcast %32 : vector<1x2x2x128xf32> to vector<8x2x2x128xf32>
    %34 = vector.shape_cast %33 : vector<8x2x2x128xf32> to vector<16x2x128xf32>
    %35 = vector.broadcast %26 : vector<16x1x128xf32> to vector<16x2x128xf32>
    %36 = arith.mulf %34, %35 : vector<16x2x128xf32>
    %37 = vector.shape_cast %25 : vector<2x2x128xf32> to vector<1x2x2x128xf32>
    %38 = vector.shape_cast %37 : vector<1x2x2x128xf32> to vector<1x2x2x128xf32>
    %39 = vector.broadcast %38 : vector<1x2x2x128xf32> to vector<8x2x2x128xf32>
    %40 = vector.shape_cast %39 : vector<8x2x2x128xf32> to vector<16x2x128xf32>
    %41 = vector.broadcast %26 : vector<16x1x128xf32> to vector<16x2x128xf32>
    %42 = arith.mulf %40, %41 : vector<16x2x128xf32>
    %43 = arith.truncf %30 : vector<16x2x128xf32> to vector<16x2x128xbf16>
    %44 = arith.truncf %36 : vector<16x2x128xf32> to vector<16x2x128xbf16>
    "tpu.trace_start"() <{level = 10 : i32, message = "nbf,ncf->nbc"}> : () -> ()
    %cst_14 = arith.constant dense<0.000000e+00> : vector<16x2x2xf32>
    %45 = tpu.matmul %43, %44, %cst_14 {dimension_numbers = #tpu.dot_dimension_numbers<[2], [2], [1], [1], [0, 0, 0, 1, 1, 1], [0], [0]>} : vector<16x2x128xbf16>, vector<16x2x128xbf16>, vector<16x2x2xf32> -> vector<16x2x2xf32>
    "tpu.trace_stop"() : () -> ()
    %cst_15 = arith.constant 2.500000e-01 : f32
    %46 = vector.broadcast %cst_15 : f32 to vector<16x2x2xf32>
    %47 = arith.mulf %45, %46 : vector<16x2x2xf32>
    %cst_16 = arith.constant dense<0xFF800000> : vector<16x2xf32>
    %48 = vector.multi_reduction <maximumf>, %47, %cst_16 [2] : vector<16x2x2xf32> to vector<16x2xf32>
    %49 = vector.shape_cast %48 : vector<16x2xf32> to vector<16x2x1xf32>
    %50 = vector.broadcast %49 : vector<16x2x1xf32> to vector<16x2x2xf32>
    %51 = arith.subf %47, %50 : vector<16x2x2xf32>
    %52 = math.exp %51 : vector<16x2x2xf32>
    %cst_17 = arith.constant dense<0.000000e+00> : vector<16x2xf32>
    %53 = vector.multi_reduction <add>, %52, %cst_17 [2] : vector<16x2x2xf32> to vector<16x2xf32>
    %54 = vector.shape_cast %53 : vector<16x2xf32> to vector<16x2x1xf32>
    %55 = tpu.reciprocal %54 {approx = true} : vector<16x2x1xf32> -> vector<16x2x1xf32>
    %56 = vector.broadcast %55 : vector<16x2x1xf32> to vector<16x2x2xf32>
    %57 = arith.mulf %52, %56 : vector<16x2x2xf32>
    %58 = arith.truncf %57 : vector<16x2x2xf32> to vector<16x2x2xbf16>
    %59 = arith.truncf %42 : vector<16x2x128xf32> to vector<16x2x128xbf16>
    "tpu.trace_start"() <{level = 10 : i32, message = "nbc,ncf->nbf"}> : () -> ()
    %cst_18 = arith.constant dense<0.000000e+00> : vector<16x2x128xf32>
    %60 = tpu.matmul %58, %59, %cst_18 {dimension_numbers = #tpu.dot_dimension_numbers<[2], [1], [1], [2], [0, 0, 0, 1, 1, 2], [0], [0]>} : vector<16x2x2xbf16>, vector<16x2x128xbf16>, vector<16x2x128xf32> -> vector<16x2x128xf32>
    "tpu.trace_stop"() : () -> ()
    %cst_19 = arith.constant dense<0.000000e+00> : vector<2x128xf32>
    %61 = vector.multi_reduction <add>, %60, %cst_19 [0] : vector<16x2x128xf32> to vector<2x128xf32>
    %cst_20 = arith.constant 5.000000e-01 : f32
    %62 = vector.broadcast %cst_20 : f32 to vector<2x128xf32>
    %63 = arith.mulf %61, %62 : vector<2x128xf32>
    %64 = arith.truncf %63 : vector<2x128xf32> to vector<2x128xbf16>
    %c0_21 = arith.constant 0 : index
    %c0_22 = arith.constant 0 : index
    %65 = vector.load %arg6[%c0_21, %c0_22] : memref<128x128xbf16, #tpu.memory_space<vmem>>, vector<128x128xbf16>
    %cst_23 = arith.constant dense<0.000000e+00> : vector<2x128xf32>
    %66 = tpu.matmul %64, %65, %cst_23 {dimension_numbers = #tpu.dot_dimension_numbers<[1], [0], [0], [1], [0, 0, 1, 1], [], []>} : vector<2x128xbf16>, vector<128x128xbf16>, vector<2x128xf32> -> vector<2x128xf32>
    %c0_24 = arith.constant 0 : index
    %c0_25 = arith.constant 0 : index
    %67 = vector.load %arg7[%c0_24, %c0_25] : memref<1x128xf32, #tpu.memory_space<vmem>>, vector<1x128xf32>
    %68 = vector.broadcast %67 : vector<1x128xf32> to vector<2x128xf32>
    %69 = arith.addf %66, %68 : vector<2x128xf32>
    %70 = arith.truncf %69 : vector<2x128xf32> to vector<2x128xbf16>
    %c0_26 = arith.constant 0 : index
    %c0_27 = arith.constant 0 : index
    %71 = vector.load %arg8[%c0_26, %c0_27] : memref<128x128xbf16, #tpu.memory_space<vmem>>, vector<128x128xbf16>
    %cst_28 = arith.constant dense<0.000000e+00> : vector<2x128xf32>
    %72 = tpu.matmul %70, %71, %cst_28 {dimension_numbers = #tpu.dot_dimension_numbers<[1], [0], [0], [1], [0, 0, 1, 1], [], []>} : vector<2x128xbf16>, vector<128x128xbf16>, vector<2x128xf32> -> vector<2x128xf32>
    %c0_29 = arith.constant 0 : index
    %c0_30 = arith.constant 0 : index
    %73 = vector.load %arg9[%c0_29, %c0_30] : memref<1x128xf32, #tpu.memory_space<vmem>>, vector<1x128xf32>
    %74 = vector.broadcast %73 : vector<1x128xf32> to vector<2x128xf32>
    %75 = arith.addf %72, %74 : vector<2x128xf32>
    %cst_31 = arith.constant 0.000000e+00 : f32
    %76 = vector.broadcast %cst_31 : f32 to vector<2x128xf32>
    %77 = arith.maximumf %75, %76 : vector<2x128xf32>
    %78 = arith.truncf %77 : vector<2x128xf32> to vector<2x128xbf16>
    %c0_32 = arith.constant 0 : index
    %c0_33 = arith.constant 0 : index
    %79 = vector.load %arg10[%c0_32, %c0_33] : memref<128x128xbf16, #tpu.memory_space<vmem>>, vector<128x128xbf16>
    %cst_34 = arith.constant dense<0.000000e+00> : vector<2x128xf32>
    %80 = tpu.matmul %78, %79, %cst_34 {dimension_numbers = #tpu.dot_dimension_numbers<[1], [0], [0], [1], [0, 0, 1, 1], [], []>} : vector<2x128xbf16>, vector<128x128xbf16>, vector<2x128xf32> -> vector<2x128xf32>
    %c0_35 = arith.constant 0 : index
    %c0_36 = arith.constant 0 : index
    %81 = vector.load %arg11[%c0_35, %c0_36] : memref<1x128xf32, #tpu.memory_space<vmem>>, vector<1x128xf32>
    %82 = vector.broadcast %81 : vector<1x128xf32> to vector<2x128xf32>
    %83 = arith.addf %80, %82 : vector<2x128xf32>
    %c0_37 = arith.constant 0 : index
    %c0_38 = arith.constant 0 : index
    %84 = vector.load %arg12[%c0_37, %c0_38] : memref<2x128xf32, #tpu.memory_space<vmem>>, vector<2x128xf32>
    tpu.vector_store %arg12[%c0_37, %c0_38], %83 {strides = array<i32>} : memref<2x128xf32, #tpu.memory_space<vmem>>, vector<2x128xf32>,
    return
  }
}

</mosaic_0001>

<llo_original>
// kernel: _lambda_.1
$region0: #{_lambda_.1}
  #allocation0 [shape = 'u32[]', space=smem, size = 0x4, offset = 0x4, fixed_abs, tag = 'smem constant byte address 0x4 - core index']
  #allocation1 [shape = 'u32[144,128]{1,0:T(1,128)}', space=vmem, size = 0x12000, scoped, tag = 'internal scratch']
  %s0 = inlined_call_operand.vmem [shape: bf16[24,128], index: 0, kind: input, shape index: {}]
  %s1 = inlined_call_operand.vmem [shape: bf16[128,128], index: 1, kind: input, shape index: {}]
  %s2 = inlined_call_operand.vmem [shape: f32[1,128], index: 2, kind: input, shape index: {}]
  %s3 = inlined_call_operand.vmem [shape: bf16[128,384], index: 3, kind: input, shape index: {}]
  %s4 = inlined_call_operand.vmem [shape: f32[1,384], index: 4, kind: input, shape index: {}]
  %s5 = inlined_call_operand.vmem [shape: f32[16,1,128], index: 5, kind: input, shape index: {}]
  %s6 = inlined_call_operand.vmem [shape: bf16[128,128], index: 6, kind: input, shape index: {}]
  %s7 = inlined_call_operand.vmem [shape: f32[1,128], index: 7, kind: input, shape index: {}]
  %s8 = inlined_call_operand.vmem [shape: bf16[128,128], index: 8, kind: input, shape index: {}]
  %s9 = inlined_call_operand.vmem [shape: f32[1,128], index: 9, kind: input, shape index: {}]
  %s10 = inlined_call_operand.vmem [shape: bf16[128,128], index: 10, kind: input, shape index: {}]
  %s11 = inlined_call_operand.vmem [shape: f32[1,128], index: 11, kind: input, shape index: {}]
  %s12 = inlined_call_operand.vmem [shape: f32[2,128], index: 12, kind: output, shape index: {}]
  %s13 = sld [smem:[#allocation0]]
  $region58: #{_lambda_.1} parent=0
    _
  %s15 = ssub.s32 1, %s13
  %s16 = scalar_select 0, %s15, %s13
  // Predicated region
  $region2: #{_lambda_.1} parent=0 // pred_check
    _
  $region3: #{_lambda_.1} parent=0 // pred_check_branch
    %18 = sbr.rel (0) target = $region5
  $region4: #{_lambda_.1} parent=0 // pred_region
    _
  $region5: #{_lambda_.1} parent=0 // pred_fallthru
    _
  // Predicated region
  $region6: #{_lambda_.1} parent=0 // pred_check
    _
  $region7: #{_lambda_.1} parent=0 // pred_check_branch
    %20 = sbr.rel (0) target = $region9
  $region8: #{_lambda_.1} parent=0 // pred_region
    _
  $region9: #{_lambda_.1} parent=0 // pred_fallthru
    _
  // Predicated region
  $region10: #{_lambda_.1} parent=0 // pred_check
    _
  $region11: #{_lambda_.1} parent=0 // pred_check_branch
    %22 = sbr.rel (0) target = $region13
  $region12: #{_lambda_.1} parent=0 // pred_region
    _
  $region13: #{_lambda_.1} parent=0 // pred_fallthru
    _
  // Predicated region
  $region14: #{_lambda_.1} parent=0 // pred_check
    _
  $region15: #{_lambda_.1} parent=0 // pred_check_branch
    %24 = sbr.rel (0) target = $region17
  $region16: #{_lambda_.1} parent=0 // pred_region
    _
  $region17: #{_lambda_.1} parent=0 // pred_fallthru
    _
  // Predicated region
  $region18: #{_lambda_.1} parent=0 // pred_check
    _
  $region19: #{_lambda_.1} parent=0 // pred_check_branch
    %26 = sbr.rel (0) target = $region21
  $region20: #{_lambda_.1} parent=0 // pred_region
    _
  $region21: #{_lambda_.1} parent=0 // pred_fallthru
    _
  // Predicated region
  $region22: #{_lambda_.1} parent=0 // pred_check
    _
  $region23: #{_lambda_.1} parent=0 // pred_check_branch
    %28 = sbr.rel (0) target = $region25
  $region24: #{_lambda_.1} parent=0 // pred_region
    _
  $region25: #{_lambda_.1} parent=0 // pred_fallthru
    _
  // Predicated region
  $region26: #{_lambda_.1} parent=0 // pred_check
    _
  $region27: #{_lambda_.1} parent=0 // pred_check_branch
    %30 = sbr.rel (0) target = $region29
  $region28: #{_lambda_.1} parent=0 // pred_region
    _
  $region29: #{_lambda_.1} parent=0 // pred_fallthru
    _
  // Predicated region
  $region30: #{_lambda_.1} parent=0 // pred_check
    _
  $region31: #{_lambda_.1} parent=0 // pred_check_branch
    %32 = sbr.rel (0) target = $region33
  $region32: #{_lambda_.1} parent=0 // pred_region
    _
  $region33: #{_lambda_.1} parent=0 // pred_fallthru
    _
  // Predicated region
  $region34: #{_lambda_.1} parent=0 // pred_check
    _
  $region35: #{_lambda_.1} parent=0 // pred_check_branch
    %34 = sbr.rel (0) target = $region37
  $region36: #{_lambda_.1} parent=0 // pred_region
    _
  $region37: #{_lambda_.1} parent=0 // pred_fallthru
    _
  // Predicated region
  $region38: #{_lambda_.1} parent=0 // pred_check
    _
  $region39: #{_lambda_.1} parent=0 // pred_check_branch
    %36 = sbr.rel (0) target = $region41
  $region40: #{_lambda_.1} parent=0 // pred_region
    _
  $region41: #{_lambda_.1} parent=0 // pred_fallthru
    _
  // Predicated region
  $region42: #{_lambda_.1} parent=0 // pred_check
    _
  $region43: #{_lambda_.1} parent=0 // pred_check_branch
    %38 = sbr.rel (0) target = $region45
  $region44: #{_lambda_.1} parent=0 // pred_region
    _
  $region45: #{_lambda_.1} parent=0 // pred_fallthru
    _
  // Predicated region
  $region46: #{_lambda_.1} parent=0 // pred_check
    _
  $region47: #{_lambda_.1} parent=0 // pred_check_branch
    %40 = sbr.rel (0) target = $region49
  $region48: #{_lambda_.1} parent=0 // pred_region
    _
  $region49: #{_lambda_.1} parent=0 // pred_fallthru
    _
  %v42 = vld [vmem:[%s0] sm:$0xf]
  %v43 = vld [vmem:[%s0 + $0x4] sm:$0xf]
  %v44 = vld [vmem:[%s0 + $0x8] sm:$0xf]
  %v45 = vld [vmem:[%s1] sm:$0xf]
  %v46 = vld [vmem:[%s1 + $0x4] sm:$0xf]
  %v47 = vld [vmem:[%s1 + $0x8] sm:$0xf]
  %v48 = vld [vmem:[%s1 + $0xc] sm:$0xf]
  %v49 = vld [vmem:[%s1 + $0x10] sm:$0xf]
  %v50 = vld [vmem:[%s1 + $0x14] sm:$0xf]
  %v51 = vld [vmem:[%s1 + $0x18] sm:$0xf]
  %v52 = vld [vmem:[%s1 + $0x1c] sm:$0xf]
  %v53 = vld [vmem:[%s1 + $0x20] sm:$0xf]
  %v54 = vld [vmem:[%s1 + $0x24] sm:$0xf]
  %v55 = vld [vmem:[%s1 + $0x28] sm:$0xf]
  %v56 = vld [vmem:[%s1 + $0x2c] sm:$0xf]
  %v57 = vld [vmem:[%s1 + $0x30] sm:$0xf]
  %v58 = vld [vmem:[%s1 + $0x34] sm:$0xf]
  %v59 = vld [vmem:[%s1 + $0x38] sm:$0xf]
  %v60 = vld [vmem:[%s1 + $0x3c] sm:$0xf]
  %v61 = vld [vmem:[%s2] sm:$0x1]
  %v63 = vlaneseq
  %v64 = vshrl.u32 %v63, 7
  %v65 = vsub.s32 0, %v64
  %v66 = vrot.slane %v61, %v65
  %v71 = vunpack.c.l.b16 %v42
  %v72 = vunpack.c.l.b16 %v43
  %v73 = vunpack.c.l.b16 %v44
  %v74 = vpack.c.b16 %v72, %v71
  %v75 = vpack.c.b16 %v73, %v73
  %v94 = vunpack.c.l.b16 %v45
  %v95 = vunpack.c.l.b16 %v46
  %v96 = vunpack.c.l.b16 %v47
  %v97 = vunpack.c.l.b16 %v48
  %v98 = vunpack.c.l.b16 %v49
  %v99 = vunpack.c.l.b16 %v50
  %v100 = vunpack.c.l.b16 %v51
  %v101 = vunpack.c.l.b16 %v52
  %v102 = vunpack.c.l.b16 %v53
  %v103 = vunpack.c.l.b16 %v54
  %v104 = vunpack.c.l.b16 %v55
  %v105 = vunpack.c.l.b16 %v56
  %v106 = vunpack.c.l.b16 %v57
  %v107 = vunpack.c.l.b16 %v58
  %v108 = vunpack.c.l.b16 %v59
  %v109 = vunpack.c.l.b16 %v60
  %v110 = vpack.c.b16 %v95, %v94
  %v111 = vpack.c.b16 %v97, %v96
  %v112 = vpack.c.b16 %v99, %v98
  %v113 = vpack.c.b16 %v101, %v100
  %v114 = vpack.c.b16 %v103, %v102
  %v115 = vpack.c.b16 %v105, %v104
  %v116 = vpack.c.b16 %v107, %v106
  %v117 = vpack.c.b16 %v109, %v108
  %126 = vmatprep.subr.bf16.mxu0 0
  %127 = vmatpush1.bf16.msra.mxu0 %v110
  %128 = vmatprep.subr.bf16.mxu0 0
  %129 = vmatpush1.bf16.msra.mxu0 %v111
  %130 = vmatprep.subr.bf16.mxu0 0
  %131 = vmatpush1.bf16.msra.mxu0 %v112
  %132 = vmatprep.subr.bf16.mxu0 0
  %133 = vmatpush1.bf16.msra.mxu0 %v113
  %134 = vmatprep.subr.bf16.mxu0 0
  %135 = vmatpush1.bf16.msra.mxu0 %v114
  %136 = vmatprep.subr.bf16.mxu0 0
  %137 = vmatpush1.bf16.msra.mxu0 %v115
  %138 = vmatprep.subr.bf16.mxu0 0
  %139 = vmatpush1.bf16.msra.mxu0 %v116
  %140 = vmatprep.subr.bf16.mxu0 0
  %141 = vmatpush1.bf16.msra.mxu0 %v117
  %142 = vmatprep.subr.bf16.mxu0 0
  %143 = vmatpush1.bf16.msra.mxu0 0
  %144 = vmatprep.subr.bf16.mxu0 0
  %145 = vmatpush1.bf16.msra.mxu0 0
  %146 = vmatprep.subr.bf16.mxu0 0
  %147 = vmatpush1.bf16.msra.mxu0 0
  %148 = vmatprep.subr.bf16.mxu0 0
  %149 = vmatpush1.bf16.msra.mxu0 0
  %150 = vmatprep.subr.bf16.mxu0 0
  %151 = vmatpush1.bf16.msra.mxu0 0
  %152 = vmatprep.subr.bf16.mxu0 0
  %153 = vmatpush1.bf16.msra.mxu0 0
  %154 = vmatprep.subr.bf16.mxu0 0
  %155 = vmatpush1.bf16.msra.mxu0 0
  %156 = vmatprep.subr.bf16.mxu0 0
  %157 = vmatpush1.bf16.msra.mxu0 0
  %158 = vmatprep.mubr.bf16.mxu0 0
  %159 = vmatmul.mubr.bf16.gmra.mrb[0].mxu0 %v74
  %v160 = vpop.f32.mrb[0].mxu0
  %v161 = vadd.f32 %v66, %v160
  %v162 = vpop.f32.mrb[0].mxu0
  %v163 = vpop.f32.mrb[0].mxu0
  %v164 = vadd.f32 %v66, %v163
  %v165 = vpop.f32.mrb[0].mxu0
  %166 = vmatprep.mubr.bf16.mxu0 0
  %167 = vmatmul.mubr.bf16.gmra.mrb[0].mxu0 %v75
  %v168 = vpop.f32.mrb[0].mxu0
  %v169 = vadd.f32 %v66, %v168
  %v170 = vpop.f32.mrb[0].mxu0
  %v171 = vpop.f32.mrb[0].mxu0
  %v172 = vpop.f32.mrb[0].mxu0
  %173 = vdwg.mxu0
  %v174 = vmax.f32 %v161, 0.0
  %v175 = vmax.f32 %v164, 0.0
  %v176 = vmax.f32 %v169, 0.0
  %v177 = vmax.f32 %v174, %v175
  %v178 = vmax.f32 %v177, %v176
  %v179 = vpack.c.bf16 %v178, %v178
  %v180 = vld [vmem:[%s3] sm:$0xff]
  %v181 = vld [vmem:[%s3 + $0x8] sm:$0xf]
  %v182 = vld [vmem:[%s3 + $0xc] sm:$0xff]
  %v183 = vld [vmem:[%s3 + $0x14] sm:$0xf]
  %v184 = vld [vmem:[%s3 + $0x18] sm:$0xff]
  %v185 = vld [vmem:[%s3 + $0x20] sm:$0xf]
  %v186 = vld [vmem:[%s3 + $0x24] sm:$0xff]
  %v187 = vld [vmem:[%s3 + $0x2c] sm:$0xf]
  %v188 = vld [vmem:[%s3 + $0x30] sm:$0xff]
  %v189 = vld [vmem:[%s3 + $0x38] sm:$0xf]
  %v190 = vld [vmem:[%s3 + $0x3c] sm:$0xff]
  %v191 = vld [vmem:[%s3 + $0x44] sm:$0xf]
  %v192 = vld [vmem:[%s3 + $0x48] sm:$0xff]
  %v193 = vld [vmem:[%s3 + $0x50] sm:$0xf]
  %v194 = vld [vmem:[%s3 + $0x54] sm:$0xff]
  %v195 = vld [vmem:[%s3 + $0x5c] sm:$0xf]
  %v196 = vld [vmem:[%s3 + $0x60] sm:$0xff]
  %v197 = vld [vmem:[%s3 + $0x68] sm:$0xf]
  %v198 = vld [vmem:[%s3 + $0x6c] sm:$0xff]
  %v199 = vld [vmem:[%s3 + $0x74] sm:$0xf]
  %v200 = vld [vmem:[%s3 + $0x78] sm:$0xff]
  %v201 = vld [vmem:[%s3 + $0x80] sm:$0xf]
  %v202 = vld [vmem:[%s3 + $0x84] sm:$0xff]
  %v203 = vld [vmem:[%s3 + $0x8c] sm:$0xf]
  %v204 = vld [vmem:[%s3 + $0x90] sm:$0xff]
  %v205 = vld [vmem:[%s3 + $0x98] sm:$0xf]
  %v206 = vld [vmem:[%s3 + $0x9c] sm:$0xff]
  %v207 = vld [vmem:[%s3 + $0xa4] sm:$0xf]
  %v208 = vld [vmem:[%s3 + $0xa8] sm:$0xff]
  %v209 = vld [vmem:[%s3 + $0xb0] sm:$0xf]
  %v210 = vld [vmem:[%s3 + $0xb4] sm:$0xff]
  %v211 = vld [vmem:[%s3 + $0xbc] sm:$0xf]
  %v212 = vld [vmem:[%s4] sm:$0x7]
  %v214 = vlaneseq
  %v215 = vshrl.u32 %v214, 7
  %v216 = vsub.s32 0, %v215
  %v217 = vrot.slane %v212, %v216
  %v218 = vlaneseq
  %v219 = vshrl.u32 %v218, 7
  %v220 = vsub.s32 1, %v219
  %v221 = vrot.slane %v212, %v220
  %v222 = vlaneseq
  %v223 = vshrl.u32 %v222, 7
  %v224 = vsub.s32 2, %v223
  %v225 = vrot.slane %v212, %v224
  %v261 = vunpack.c.l.b16 %v180
  %v262 = vunpack.c.h.b16 %v180
  %v263 = vunpack.c.l.b16 %v181
  %v264 = vunpack.c.l.b16 %v182
  %v265 = vunpack.c.h.b16 %v182
  %v266 = vunpack.c.l.b16 %v183
  %v267 = vunpack.c.l.b16 %v184
  %v268 = vunpack.c.h.b16 %v184
  %v269 = vunpack.c.l.b16 %v185
  %v270 = vunpack.c.l.b16 %v186
  %v271 = vunpack.c.h.b16 %v186
  %v272 = vunpack.c.l.b16 %v187
  %v273 = vunpack.c.l.b16 %v188
  %v274 = vunpack.c.h.b16 %v188
  %v275 = vunpack.c.l.b16 %v189
  %v276 = vunpack.c.l.b16 %v190
  %v277 = vunpack.c.h.b16 %v190
  %v278 = vunpack.c.l.b16 %v191
  %v279 = vunpack.c.l.b16 %v192
  %v280 = vunpack.c.h.b16 %v192
  %v281 = vunpack.c.l.b16 %v193
  %v282 = vunpack.c.l.b16 %v194
  %v283 = vunpack.c.h.b16 %v194
  %v284 = vunpack.c.l.b16 %v195
  %v285 = vunpack.c.l.b16 %v196
  %v286 = vunpack.c.h.b16 %v196
  %v287 = vunpack.c.l.b16 %v197
  %v288 = vunpack.c.l.b16 %v198
  %v289 = vunpack.c.h.b16 %v198
  %v290 = vunpack.c.l.b16 %v199
  %v291 = vunpack.c.l.b16 %v200
  %v292 = vunpack.c.h.b16 %v200
  %v293 = vunpack.c.l.b16 %v201
  %v294 = vunpack.c.l.b16 %v202
  %v295 = vunpack.c.h.b16 %v202
  %v296 = vunpack.c.l.b16 %v203
  %v297 = vunpack.c.l.b16 %v204
  %v298 = vunpack.c.h.b16 %v204
  %v299 = vunpack.c.l.b16 %v205
  %v300 = vunpack.c.l.b16 %v206
  %v301 = vunpack.c.h.b16 %v206
  %v302 = vunpack.c.l.b16 %v207
  %v303 = vunpack.c.l.b16 %v208
  %v304 = vunpack.c.h.b16 %v208
  %v305 = vunpack.c.l.b16 %v209
  %v306 = vunpack.c.l.b16 %v210
  %v307 = vunpack.c.h.b16 %v210
  %v308 = vunpack.c.l.b16 %v211
  %v309 = vpack.c.b16 %v264, %v261
  %v310 = vpack.c.b16 %v265, %v262
  %v311 = vpack.c.b16 %v266, %v263
  %v312 = vpack.c.b16 %v270, %v267
  %v313 = vpack.c.b16 %v271, %v268
  %v314 = vpack.c.b16 %v272, %v269
  %v315 = vpack.c.b16 %v276, %v273
  %v316 = vpack.c.b16 %v277, %v274
  %v317 = vpack.c.b16 %v278, %v275
  %v318 = vpack.c.b16 %v282, %v279
  %v319 = vpack.c.b16 %v283, %v280
  %v320 = vpack.c.b16 %v284, %v281
  %v321 = vpack.c.b16 %v288, %v285
  %v322 = vpack.c.b16 %v289, %v286
  %v323 = vpack.c.b16 %v290, %v287
  %v324 = vpack.c.b16 %v294, %v291
  %v325 = vpack.c.b16 %v295, %v292
  %v326 = vpack.c.b16 %v296, %v293
  %v327 = vpack.c.b16 %v300, %v297
  %v328 = vpack.c.b16 %v301, %v298
  %v329 = vpack.c.b16 %v302, %v299
  %v330 = vpack.c.b16 %v306, %v303
  %v331 = vpack.c.b16 %v307, %v304
  %v332 = vpack.c.b16 %v308, %v305
  %357 = vmatprep.subr.bf16.mxu0 %v310
  %358 = vmatpush1.bf16.msra.mxu0 %v309
  %359 = vmatprep.subr.bf16.mxu0 %v313
  %360 = vmatpush1.bf16.msra.mxu0 %v312
  %361 = vmatprep.subr.bf16.mxu0 %v316
  %362 = vmatpush1.bf16.msra.mxu0 %v315
  %363 = vmatprep.subr.bf16.mxu0 %v319
  %364 = vmatpush1.bf16.msra.mxu0 %v318
  %365 = vmatprep.subr.bf16.mxu0 %v322
  %366 = vmatpush1.bf16.msra.mxu0 %v321
  %367 = vmatprep.subr.bf16.mxu0 %v325
  %368 = vmatpush1.bf16.msra.mxu0 %v324
  %369 = vmatprep.subr.bf16.mxu0 %v328
  %370 = vmatpush1.bf16.msra.mxu0 %v327
  %371 = vmatprep.subr.bf16.mxu0 %v331
  %372 = vmatpush1.bf16.msra.mxu0 %v330
  %373 = vmatprep.subr.bf16.mxu0 0
  %374 = vmatpush1.bf16.msra.mxu0 0
  %375 = vmatprep.subr.bf16.mxu0 0
  %376 = vmatpush1.bf16.msra.mxu0 0
  %377 = vmatprep.subr.bf16.mxu0 0
  %378 = vmatpush1.bf16.msra.mxu0 0
  %379 = vmatprep.subr.bf16.mxu0 0
  %380 = vmatpush1.bf16.msra.mxu0 0
  %381 = vmatprep.subr.bf16.mxu0 0
  %382 = vmatpush1.bf16.msra.mxu0 0
  %383 = vmatprep.subr.bf16.mxu0 0
  %384 = vmatpush1.bf16.msra.mxu0 0
  %385 = vmatprep.subr.bf16.mxu0 0
  %386 = vmatpush1.bf16.msra.mxu0 0
  %387 = vmatprep.subr.bf16.mxu0 0
  %388 = vmatpush1.bf16.msra.mxu0 0
  %389 = vmatprep.mubr.bf16.mxu0 0
  %390 = vmatmul.mubr.bf16.gmra.mrb[0].mxu0 %v179
  %v391 = vpop.f32.mrb[0].mxu0
  %v392 = vadd.f32 %v217, %v391
  %v393 = vpop.f32.mrb[0].mxu0
  %v394 = vadd.f32 %v221, %v393
  %v395 = vpop.f32.mrb[0].mxu0
  %v396 = vpop.f32.mrb[0].mxu0
  %397 = vdwg.mxu0
  %398 = vmatprep.subr.bf16.mxu0 0
  %399 = vmatpush1.bf16.msra.mxu0 %v311
  %400 = vmatprep.subr.bf16.mxu0 0
  %401 = vmatpush1.bf16.msra.mxu0 %v314
  %402 = vmatprep.subr.bf16.mxu0 0
  %403 = vmatpush1.bf16.msra.mxu0 %v317
  %404 = vmatprep.subr.bf16.mxu0 0
  %405 = vmatpush1.bf16.msra.mxu0 %v320
  %406 = vmatprep.subr.bf16.mxu0 0
  %407 = vmatpush1.bf16.msra.mxu0 %v323
  %408 = vmatprep.subr.bf16.mxu0 0
  %409 = vmatpush1.bf16.msra.mxu0 %v326
  %410 = vmatprep.subr.bf16.mxu0 0
  %411 = vmatpush1.bf16.msra.mxu0 %v329
  %412 = vmatprep.subr.bf16.mxu0 0
  %413 = vmatpush1.bf16.msra.mxu0 %v332
  %414 = vmatprep.subr.bf16.mxu0 0
  %415 = vmatpush1.bf16.msra.mxu0 0
  %416 = vmatprep.subr.bf16.mxu0 0
  %417 = vmatpush1.bf16.msra.mxu0 0
  %418 = vmatprep.subr.bf16.mxu0 0
  %419 = vmatpush1.bf16.msra.mxu0 0
  %420 = vmatprep.subr.bf16.mxu0 0
  %421 = vmatpush1.bf16.msra.mxu0 0
  %422 = vmatprep.subr.bf16.mxu0 0
  %423 = vmatpush1.bf16.msra.mxu0 0
  %424 = vmatprep.subr.bf16.mxu0 0
  %425 = vmatpush1.bf16.msra.mxu0 0
  %426 = vmatprep.subr.bf16.mxu0 0
  %427 = vmatpush1.bf16.msra.mxu0 0
  %428 = vmatprep.subr.bf16.mxu0 0
  %429 = vmatpush1.bf16.msra.mxu0 0
  %430 = vmatprep.mubr.bf16.mxu0 0
  %431 = vmatmul.mubr.bf16.gmra.mrb[0].mxu0 %v179
  %v432 = vpop.f32.mrb[0].mxu0
  %v433 = vadd.f32 %v225, %v432
  %v434 = vpop.f32.mrb[0].mxu0
  %v435 = vpop.f32.mrb[0].mxu0
  %v436 = vpop.f32.mrb[0].mxu0
  %437 = vdwg.mxu0
  %v438 = vld [vmem:[%s5] sm:$0x1]
  %v439 = vld [vmem:[%s5 + $0x1] sm:$0x1]
  %v440 = vld [vmem:[%s5 + $0x2] sm:$0x1]
  %v441 = vld [vmem:[%s5 + $0x3] sm:$0x1]
  %v442 = vld [vmem:[%s5 + $0x4] sm:$0x1]
  %v443 = vld [vmem:[%s5 + $0x5] sm:$0x1]
  %v444 = vld [vmem:[%s5 + $0x6] sm:$0x1]
  %v445 = vld [vmem:[%s5 + $0x7] sm:$0x1]
  %v446 = vld [vmem:[%s5 + $0x8] sm:$0x1]
  %v447 = vld [vmem:[%s5 + $0x9] sm:$0x1]
  %v448 = vld [vmem:[%s5 + $0xa] sm:$0x1]
  %v449 = vld [vmem:[%s5 + $0xb] sm:$0x1]
  %v450 = vld [vmem:[%s5 + $0xc] sm:$0x1]
  %v451 = vld [vmem:[%s5 + $0xd] sm:$0x1]
  %v452 = vld [vmem:[%s5 + $0xe] sm:$0x1]
  %v453 = vld [vmem:[%s5 + $0xf] sm:$0x1]
  %v456 = vunpack.c.l.s4 1983009808
  %v457 = vunpack.c.0.s8 %v456
  %v458 = vlaneseq
  %v459 = vshrl.u32 %v458, 7
  %v460 = vsub.s32 %v457, %v459
  %v461 = vrot.slane %v392, %v460
  %v462 = vcombine.high %v461, %v461
  %v467 = vunpack.c.l.s4 1983009808
  %v468 = vunpack.c.0.s8 %v467
  %v469 = vlaneseq
  %v470 = vshrl.u32 %v469, 7
  %v471 = vsub.s32 %v468, %v470
  %v472 = vrot.slane %v394, %v471
  %v473 = vcombine.high %v472, %v472
  %v492 = vlaneseq
  %v493 = vshrl.u32 %v492, 7
  %v494 = vsub.s32 0, %v493
  %v495 = vrot.slane %v438, %v494
  %v496 = vlaneseq
  %v497 = vshrl.u32 %v496, 7
  %v498 = vsub.s32 0, %v497
  %v499 = vrot.slane %v439, %v498
  %v500 = vlaneseq
  %v501 = vshrl.u32 %v500, 7
  %v502 = vsub.s32 0, %v501
  %v503 = vrot.slane %v440, %v502
  %v504 = vlaneseq
  %v505 = vshrl.u32 %v504, 7
  %v506 = vsub.s32 0, %v505
  %v507 = vrot.slane %v441, %v506
  %v508 = vlaneseq
  %v509 = vshrl.u32 %v508, 7
  %v510 = vsub.s32 0, %v509
  %v511 = vrot.slane %v442, %v510
  %v512 = vlaneseq
  %v513 = vshrl.u32 %v512, 7
  %v514 = vsub.s32 0, %v513
  %v515 = vrot.slane %v443, %v514
  %v516 = vlaneseq
  %v517 = vshrl.u32 %v516, 7
  %v518 = vsub.s32 0, %v517
  %v519 = vrot.slane %v444, %v518
  %v520 = vlaneseq
  %v521 = vshrl.u32 %v520, 7
  %v522 = vsub.s32 0, %v521
  %v523 = vrot.slane %v445, %v522
  %v524 = vlaneseq
  %v525 = vshrl.u32 %v524, 7
  %v526 = vsub.s32 0, %v525
  %v527 = vrot.slane %v446, %v526
  %v528 = vlaneseq
  %v529 = vshrl.u32 %v528, 7
  %v530 = vsub.s32 0, %v529
  %v531 = vrot.slane %v447, %v530
  %v532 = vlaneseq
  %v533 = vshrl.u32 %v532, 7
  %v534 = vsub.s32 0, %v533
  %v535 = vrot.slane %v448, %v534
  %v536 = vlaneseq
  %v537 = vshrl.u32 %v536, 7
  %v538 = vsub.s32 0, %v537
  %v539 = vrot.slane %v449, %v538
  %v540 = vlaneseq
  %v541 = vshrl.u32 %v540, 7
  %v542 = vsub.s32 0, %v541
  %v543 = vrot.slane %v450, %v542
  %v544 = vlaneseq
  %v545 = vshrl.u32 %v544, 7
  %v546 = vsub.s32 0, %v545
  %v547 = vrot.slane %v451, %v546
  %v548 = vlaneseq
  %v549 = vshrl.u32 %v548, 7
  %v550 = vsub.s32 0, %v549
  %v551 = vrot.slane %v452, %v550
  %v552 = vlaneseq
  %v553 = vshrl.u32 %v552, 7
  %v554 = vsub.s32 0, %v553
  %v555 = vrot.slane %v453, %v554
  %v572 = vmul.f32 %v472, %v495
  %v573 = vmul.f32 %v473, %v499
  %v574 = vmul.f32 %v472, %v503
  %v575 = vmul.f32 %v473, %v507
  %v576 = vmul.f32 %v472, %v511
  %v577 = vmul.f32 %v473, %v515
  %v578 = vmul.f32 %v472, %v519
  %v579 = vmul.f32 %v473, %v523
  %v580 = vmul.f32 %v472, %v527
  %v581 = vmul.f32 %v473, %v531
  %v582 = vmul.f32 %v472, %v535
  %v583 = vmul.f32 %v473, %v539
  %v584 = vmul.f32 %v472, %v543
  %v585 = vmul.f32 %v473, %v547
  %v586 = vmul.f32 %v472, %v551
  %v587 = vmul.f32 %v473, %v555
  %v590 = vunpack.c.l.s4 1983009808
  %v591 = vunpack.c.0.s8 %v590
  %v592 = vlaneseq
  %v593 = vshrl.u32 %v592, 7
  %v594 = vsub.s32 %v591, %v593
  %v595 = vrot.slane %v433, %v594
  %v596 = vcombine.high %v595, %v595
  %v599 = vmul.f32 %v595, %v495
  %v600 = vmul.f32 %v596, %v499
  %v601 = vmul.f32 %v595, %v503
  %v602 = vmul.f32 %v596, %v507
  %v603 = vmul.f32 %v595, %v511
  %v604 = vmul.f32 %v596, %v515
  %v605 = vmul.f32 %v595, %v519
  %v606 = vmul.f32 %v596, %v523
  %v607 = vmul.f32 %v595, %v527
  %v608 = vmul.f32 %v596, %v531
  %v609 = vmul.f32 %v595, %v535
  %v610 = vmul.f32 %v596, %v539
  %v611 = vmul.f32 %v595, %v543
  %v612 = vmul.f32 %v596, %v547
  %v613 = vmul.f32 %v595, %v551
  %v614 = vmul.f32 %v596, %v555
  %v615 = vpack.c.bf16 %v461, %v461
  %v616 = vpack.c.bf16 %v462, %v462
  %v617 = vpack.c.bf16 %v572, %v572
  %v618 = vpack.c.bf16 %v573, %v573
  %v619 = vpack.c.bf16 %v574, %v574
  %v620 = vpack.c.bf16 %v575, %v575
  %v621 = vpack.c.bf16 %v576, %v576
  %v622 = vpack.c.bf16 %v577, %v577
  %v623 = vpack.c.bf16 %v578, %v578
  %v624 = vpack.c.bf16 %v579, %v579
  %v625 = vpack.c.bf16 %v580, %v580
  %v626 = vpack.c.bf16 %v581, %v581
  %v627 = vpack.c.bf16 %v582, %v582
  %v628 = vpack.c.bf16 %v583, %v583
  %v629 = vpack.c.bf16 %v584, %v584
  %v630 = vpack.c.bf16 %v585, %v585
  %v631 = vpack.c.bf16 %v586, %v586
  %v632 = vpack.c.bf16 %v587, %v587
  %633 = vmatprep.subr.bf16.mxu0 0
  %634 = vmatpush1.bf16.xpose.msra.mxu0 %v617
  %635 = vmatprep.subr.bf16.mxu0 0
  %636 = vmatpush1.bf16.xpose.msra.mxu0 0
  %637 = vmatprep.subr.bf16.mxu0 0
  %638 = vmatpush1.bf16.xpose.msra.mxu0 0
  %639 = vmatprep.subr.bf16.mxu0 0
  %640 = vmatpush1.bf16.xpose.msra.mxu0 0
  %641 = vmatprep.subr.bf16.mxu0 0
  %642 = vmatpush1.bf16.xpose.msra.mxu0 0
  %643 = vmatprep.subr.bf16.mxu0 0
  %644 = vmatpush1.bf16.xpose.msra.mxu0 0
  %645 = vmatprep.subr.bf16.mxu0 0
  %646 = vmatpush1.bf16.xpose.msra.mxu0 0
  %647 = vmatprep.subr.bf16.mxu0 0
  %648 = vmatpush1.bf16.xpose.msra.mxu0 0
  %649 = vmatprep.subr.bf16.mxu0 0
  %650 = vmatpush1.bf16.xpose.msra.mxu0 0
  %651 = vmatprep.subr.bf16.mxu0 0
  %652 = vmatpush1.bf16.xpose.msra.mxu0 0
  %653 = vmatprep.subr.bf16.mxu0 0
  %654 = vmatpush1.bf16.xpose.msra.mxu0 0
  %655 = vmatprep.subr.bf16.mxu0 0
  %656 = vmatpush1.bf16.xpose.msra.mxu0 0
  %657 = vmatprep.subr.bf16.mxu0 0
  %658 = vmatpush1.bf16.xpose.msra.mxu0 0
  %659 = vmatprep.subr.bf16.mxu0 0
  %660 = vmatpush1.bf16.xpose.msra.mxu0 0
  %661 = vmatprep.subr.bf16.mxu0 0
  %662 = vmatpush1.bf16.xpose.msra.mxu0 0
  %663 = vmatprep.subr.bf16.mxu0 0
  %664 = vmatpush1.bf16.xpose.msra.mxu0 0
  %665 = vmatprep.mubr.bf16.mxu0 0
  %666 = vmatmul.mubr.bf16.gmra.mrb[0].mxu0 %v615
  %v667 = vpop.f32.mrb[0].mxu0
  %v668 = vadd.f32 0.0, %v667
  %v669 = vpop.f32.mrb[0].mxu0
  %v670 = vpop.f32.mrb[0].mxu0
  %v671 = vpop.f32.mrb[0].mxu0
  %672 = vdwg.mxu0
  %673 = vmatprep.subr.bf16.mxu0 0
  %674 = vmatpush1.bf16.xpose.msra.mxu0 %v618
  %675 = vmatprep.subr.bf16.mxu0 0
  %676 = vmatpush1.bf16.xpose.msra.mxu0 0
  %677 = vmatprep.subr.bf16.mxu0 0
  %678 = vmatpush1.bf16.xpose.msra.mxu0 0
  %679 = vmatprep.subr.bf16.mxu0 0
  %680 = vmatpush1.bf16.xpose.msra.mxu0 0
  %681 = vmatprep.subr.bf16.mxu0 0
  %682 = vmatpush1.bf16.xpose.msra.mxu0 0
  %683 = vmatprep.subr.bf16.mxu0 0
  %684 = vmatpush1.bf16.xpose.msra.mxu0 0
  %685 = vmatprep.subr.bf16.mxu0 0
  %686 = vmatpush1.bf16.xpose.msra.mxu0 0
  %687 = vmatprep.subr.bf16.mxu0 0
  %688 = vmatpush1.bf16.xpose.msra.mxu0 0
  %689 = vmatprep.subr.bf16.mxu0 0
  %690 = vmatpush1.bf16.xpose.msra.mxu0 0
  %691 = vmatprep.subr.bf16.mxu0 0
  %692 = vmatpush1.bf16.xpose.msra.mxu0 0
  %693 = vmatprep.subr.bf16.mxu0 0
  %694 = vmatpush1.bf16.xpose.msra.mxu0 0
  %695 = vmatprep.subr.bf16.mxu0 0
  %696 = vmatpush1.bf16.xpose.msra.mxu0 0
  %697 = vmatprep.subr.bf16.mxu0 0
  %698 = vmatpush1.bf16.xpose.msra.mxu0 0
  %699 = vmatprep.subr.bf16.mxu0 0
  %700 = vmatpush1.bf16.xpose.msra.mxu0 0
  %701 = vmatprep.subr.bf16.mxu0 0
  %702 = vmatpush1.bf16.xpose.msra.mxu0 0
  %703 = vmatprep.subr.bf16.mxu0 0
  %704 = vmatpush1.bf16.xpose.msra.mxu0 0
  %705 = vmatprep.mubr.bf16.mxu0 0
  %706 = vmatmul.mubr.bf16.gmra.mrb[0].mxu0 %v616
  %v707 = vpop.f32.mrb[0].mxu0
  %v708 = vadd.f32 0.0, %v707
  %v709 = vpop.f32.mrb[0].mxu0
  %v710 = vpop.f32.mrb[0].mxu0
  %v711 = vpop.f32.mrb[0].mxu0
  %712 = vdwg.mxu0
  %713 = vmatprep.subr.bf16.mxu0 0
  %714 = vmatpush1.bf16.xpose.msra.mxu0 %v619
  %715 = vmatprep.subr.bf16.mxu0 0
  %716 = vmatpush1.bf16.xpose.msra.mxu0 0
  %717 = vmatprep.subr.bf16.mxu0 0
  %718 = vmatpush1.bf16.xpose.msra.mxu0 0
  %719 = vmatprep.subr.bf16.mxu0 0
  %720 = vmatpush1.bf16.xpose.msra.mxu0 0
  %721 = vmatprep.subr.bf16.mxu0 0
  %722 = vmatpush1.bf16.xpose.msra.mxu0 0
  %723 = vmatprep.subr.bf16.mxu0 0
  %724 = vmatpush1.bf16.xpose.msra.mxu0 0
  %725 = vmatprep.subr.bf16.mxu0 0
  %726 = vmatpush1.bf16.xpose.msra.mxu0 0
  %727 = vmatprep.subr.bf16.mxu0 0
  %728 = vmatpush1.bf16.xpose.msra.mxu0 0
  %729 = vmatprep.subr.bf16.mxu0 0
  %730 = vmatpush1.bf16.xpose.msra.mxu0 0
  %731 = vmatprep.subr.bf16.mxu0 0
  %732 = vmatpush1.bf16.xpose.msra.mxu0 0
  %733 = vmatprep.subr.bf16.mxu0 0
  %734 = vmatpush1.bf16.xpose.msra.mxu0 0
  %735 = vmatprep.subr.bf16.mxu0 0
  %736 = vmatpush1.bf16.xpose.msra.mxu0 0
  %737 = vmatprep.subr.bf16.mxu0 0
  %738 = vmatpush1.bf16.xpose.msra.mxu0 0
  %739 = vmatprep.subr.bf16.mxu0 0
  %740 = vmatpush1.bf16.xpose.msra.mxu0 0
  %741 = vmatprep.subr.bf16.mxu0 0
  %742 = vmatpush1.bf16.xpose.msra.mxu0 0
  %743 = vmatprep.subr.bf16.mxu0 0
  %744 = vmatpush1.bf16.xpose.msra.mxu0 0
  %745 = vmatprep.mubr.bf16.mxu0 0
  %746 = vmatmul.mubr.bf16.gmra.mrb[0].mxu0 %v615
  %v747 = vpop.f32.mrb[0].mxu0
  %v748 = vadd.f32 0.0, %v747
  %v749 = vpop.f32.mrb[0].mxu0
  %v750 = vpop.f32.mrb[0].mxu0
  %v751 = vpop.f32.mrb[0].mxu0
  %752 = vdwg.mxu0
  %753 = vmatprep.subr.bf16.mxu0 0
  %754 = vmatpush1.bf16.xpose.msra.mxu0 %v620
  %755 = vmatprep.subr.bf16.mxu0 0
  %756 = vmatpush1.bf16.xpose.msra.mxu0 0
  %757 = vmatprep.subr.bf16.mxu0 0
  %758 = vmatpush1.bf16.xpose.msra.mxu0 0
  %759 = vmatprep.subr.bf16.mxu0 0
  %760 = vmatpush1.bf16.xpose.msra.mxu0 0
  %761 = vmatprep.subr.bf16.mxu0 0
  %762 = vmatpush1.bf16.xpose.msra.mxu0 0
  %763 = vmatprep.subr.bf16.mxu0 0
  %764 = vmatpush1.bf16.xpose.msra.mxu0 0
  %765 = vmatprep.subr.bf16.mxu0 0
  %766 = vmatpush1.bf16.xpose.msra.mxu0 0
  %767 = vmatprep.subr.bf16.mxu0 0
  %768 = vmatpush1.bf16.xpose.msra.mxu0 0
  %769 = vmatprep.subr.bf16.mxu0 0
  %770 = vmatpush1.bf16.xpose.msra.mxu0 0
  %771 = vmatprep.subr.bf16.mxu0 0
  %772 = vmatpush1.bf16.xpose.msra.mxu0 0
  %773 = vmatprep.subr.bf16.mxu0 0
  %774 = vmatpush1.bf16.xpose.msra.mxu0 0
  %775 = vmatprep.subr.bf16.mxu0 0
  %776 = vmatpush1.bf16.xpose.msra.mxu0 0
  %777 = vmatprep.subr.bf16.mxu0 0
  %778 = vmatpush1.bf16.xpose.msra.mxu0 0
  %779 = vmatprep.subr.bf16.mxu0 0
  %780 = vmatpush1.bf16.xpose.msra.mxu0 0
  %781 = vmatprep.subr.bf16.mxu0 0
  %782 = vmatpush1.bf16.xpose.msra.mxu0 0
  %783 = vmatprep.subr.bf16.mxu0 0
  %784 = vmatpush1.bf16.xpose.msra.mxu0 0
  %785 = vmatprep.mubr.bf16.mxu0 0
  %786 = vmatmul.mubr.bf16.gmra.mrb[0].mxu0 %v616
  %v787 = vpop.f32.mrb[0].mxu0
  %v788 = vadd.f32 0.0, %v787
  %v789 = vpop.f32.mrb[0].mxu0
  %v790 = vpop.f32.mrb[0].mxu0
  %v791 = vpop.f32.mrb[0].mxu0
  %792 = vdwg.mxu0
  %793 = vmatprep.subr.bf16.mxu0 0
  %794 = vmatpush1.bf16.xpose.msra.mxu0 %v621
  %795 = vmatprep.subr.bf16.mxu0 0
  %796 = vmatpush1.bf16.xpose.msra.mxu0 0
  %797 = vmatprep.subr.bf16.mxu0 0
  %798 = vmatpush1.bf16.xpose.msra.mxu0 0
  %799 = vmatprep.subr.bf16.mxu0 0
  %800 = vmatpush1.bf16.xpose.msra.mxu0 0
  %801 = vmatprep.subr.bf16.mxu0 0
  %802 = vmatpush1.bf16.xpose.msra.mxu0 0
  %803 = vmatprep.subr.bf16.mxu0 0
  %804 = vmatpush1.bf16.xpose.msra.mxu0 0
  %805 = vmatprep.subr.bf16.mxu0 0
  %806 = vmatpush1.bf16.xpose.msra.mxu0 0
  %807 = vmatprep.subr.bf16.mxu0 0
  %808 = vmatpush1.bf16.xpose.msra.mxu0 0
  %809 = vmatprep.subr.bf16.mxu0 0
  %810 = vmatpush1.bf16.xpose.msra.mxu0 0
  %811 = vmatprep.subr.bf16.mxu0 0
  %812 = vmatpush1.bf16.xpose.msra.mxu0 0
  %813 = vmatprep.subr.bf16.mxu0 0
  %814 = vmatpush1.bf16.xpose.msra.mxu0 0
  %815 = vmatprep.subr.bf16.mxu0 0
  %816 = vmatpush1.bf16.xpose.msra.mxu0 0
  %817 = vmatprep.subr.bf16.mxu0 0
  %818 = vmatpush1.bf16.xpose.msra.mxu0 0
  %819 = vmatprep.subr.bf16.mxu0 0
  %820 = vmatpush1.bf16.xpose.msra.mxu0 0
  %821 = vmatprep.subr.bf16.mxu0 0
  %822 = vmatpush1.bf16.xpose.msra.mxu0 0
  %823 = vmatprep.subr.bf16.mxu0 0
  %824 = vmatpush1.bf16.xpose.msra.mxu0 0
  %825 = vmatprep.mubr.bf16.mxu0 0
  %826 = vmatmul.mubr.bf16.gmra.mrb[0].mxu0 %v615
  %v827 = vpop.f32.mrb[0].mxu0
  %v828 = vadd.f32 0.0, %v827
  %v829 = vpop.f32.mrb[0].mxu0
  %v830 = vpop.f32.mrb[0].mxu0
  %v831 = vpop.f32.mrb[0].mxu0
  %832 = vdwg.mxu0
  %833 = vmatprep.subr.bf16.mxu0 0
  %834 = vmatpush1.bf16.xpose.msra.mxu0 %v622
  %835 = vmatprep.subr.bf16.mxu0 0
  %836 = vmatpush1.bf16.xpose.msra.mxu0 0
  %837 = vmatprep.subr.bf16.mxu0 0
  %838 = vmatpush1.bf16.xpose.msra.mxu0 0
  %839 = vmatprep.subr.bf16.mxu0 0
  %840 = vmatpush1.bf16.xpose.msra.mxu0 0
  %841 = vmatprep.subr.bf16.mxu0 0
  %842 = vmatpush1.bf16.xpose.msra.mxu0 0
  %843 = vmatprep.subr.bf16.mxu0 0
  %844 = vmatpush1.bf16.xpose.msra.mxu0 0
  %845 = vmatprep.subr.bf16.mxu0 0
  %846 = vmatpush1.bf16.xpose.msra.mxu0 0
  %847 = vmatprep.subr.bf16.mxu0 0
  %848 = vmatpush1.bf16.xpose.msra.mxu0 0
  %849 = vmatprep.subr.bf16.mxu0 0
  %850 = vmatpush1.bf16.xpose.msra.mxu0 0
  %851 = vmatprep.subr.bf16.mxu0 0
  %852 = vmatpush1.bf16.xpose.msra.mxu0 0
  %853 = vmatprep.subr.bf16.mxu0 0
  %854 = vmatpush1.bf16.xpose.msra.mxu0 0
  %855 = vmatprep.subr.bf16.mxu0 0
  %856 = vmatpush1.bf16.xpose.msra.mxu0 0
  %857 = vmatprep.subr.bf16.mxu0 0
  %858 = vmatpush1.bf16.xpose.msra.mxu0 0
  %859 = vmatprep.subr.bf16.mxu0 0
  %860 = vmatpush1.bf16.xpose.msra.mxu0 0
  %861 = vmatprep.subr.bf16.mxu0 0
  %862 = vmatpush1.bf16.xpose.msra.mxu0 0
  %863 = vmatprep.subr.bf16.mxu0 0
  %864 = vmatpush1.bf16.xpose.msra.mxu0 0
  %865 = vmatprep.mubr.bf16.mxu0 0
  %866 = vmatmul.mubr.bf16.gmra.mrb[0].mxu0 %v616
  %v867 = vpop.f32.mrb[0].mxu0
  %v868 = vadd.f32 0.0, %v867
  %v869 = vpop.f32.mrb[0].mxu0
  %v870 = vpop.f32.mrb[0].mxu0
  %v871 = vpop.f32.mrb[0].mxu0
  %872 = vdwg.mxu0
  %873 = vmatprep.subr.bf16.mxu0 0
  %874 = vmatpush1.bf16.xpose.msra.mxu0 %v623
  %875 = vmatprep.subr.bf16.mxu0 0
  %876 = vmatpush1.bf16.xpose.msra.mxu0 0
  %877 = vmatprep.subr.bf16.mxu0 0
  %878 = vmatpush1.bf16.xpose.msra.mxu0 0
  %879 = vmatprep.subr.bf16.mxu0 0
  %880 = vmatpush1.bf16.xpose.msra.mxu0 0
  %881 = vmatprep.subr.bf16.mxu0 0
  %882 = vmatpush1.bf16.xpose.msra.mxu0 0
  %883 = vmatprep.subr.bf16.mxu0 0
  %884 = vmatpush1.bf16.xpose.msra.mxu0 0
  %885 = vmatprep.subr.bf16.mxu0 0
  %886 = vmatpush1.bf16.xpose.msra.mxu0 0
  %887 = vmatprep.subr.bf16.mxu0 0
  %888 = vmatpush1.bf16.xpose.msra.mxu0 0
  %889 = vmatprep.subr.bf16.mxu0 0
  %890 = vmatpush1.bf16.xpose.msra.mxu0 0
  %891 = vmatprep.subr.bf16.mxu0 0
  %892 = vmatpush1.bf16.xpose.msra.mxu0 0
  %893 = vmatprep.subr.bf16.mxu0 0
  %894 = vmatpush1.bf16.xpose.msra.mxu0 0
  %895 = vmatprep.subr.bf16.mxu0 0
  %896 = vmatpush1.bf16.xpose.msra.mxu0 0
  %897 = vmatprep.subr.bf16.mxu0 0
  %898 = vmatpush1.bf16.xpose.msra.mxu0 0
  %899 = vmatprep.subr.bf16.mxu0 0
  %900 = vmatpush1.bf16.xpose.msra.mxu0 0
  %901 = vmatprep.subr.bf16.mxu0 0
  %902 = vmatpush1.bf16.xpose.msra.mxu0 0
  %903 = vmatprep.subr.bf16.mxu0 0
  %904 = vmatpush1.bf16.xpose.msra.mxu0 0
  %905 = vmatprep.mubr.bf16.mxu0 0
  %906 = vmatmul.mubr.bf16.gmra.mrb[0].mxu0 %v615
  %v907 = vpop.f32.mrb[0].mxu0
  %v908 = vadd.f32 0.0, %v907
  %v909 = vpop.f32.mrb[0].mxu0
  %v910 = vpop.f32.mrb[0].mxu0
  %v911 = vpop.f32.mrb[0].mxu0
  %912 = vdwg.mxu0
  %913 = vmatprep.subr.bf16.mxu0 0
  %914 = vmatpush1.bf16.xpose.msra.mxu0 %v624
  %915 = vmatprep.subr.bf16.mxu0 0
  %916 = vmatpush1.bf16.xpose.msra.mxu0 0
  %917 = vmatprep.subr.bf16.mxu0 0
  %918 = vmatpush1.bf16.xpose.msra.mxu0 0
  %919 = vmatprep.subr.bf16.mxu0 0
  %920 = vmatpush1.bf16.xpose.msra.mxu0 0
  %921 = vmatprep.subr.bf16.mxu0 0
  %922 = vmatpush1.bf16.xpose.msra.mxu0 0
  %923 = vmatprep.subr.bf16.mxu0 0
  %924 = vmatpush1.bf16.xpose.msra.mxu0 0
  %925 = vmatprep.subr.bf16.mxu0 0
  %926 = vmatpush1.bf16.xpose.msra.mxu0 0
  %927 = vmatprep.subr.bf16.mxu0 0
  %928 = vmatpush1.bf16.xpose.msra.mxu0 0
  %929 = vmatprep.subr.bf16.mxu0 0
  %930 = vmatpush1.bf16.xpose.msra.mxu0 0
  %931 = vmatprep.subr.bf16.mxu0 0
  %932 = vmatpush1.bf16.xpose.msra.mxu0 0
  %933 = vmatprep.subr.bf16.mxu0 0
  %934 = vmatpush1.bf16.xpose.msra.mxu0 0
  %935 = vmatprep.subr.bf16.mxu0 0
  %936 = vmatpush1.bf16.xpose.msra.mxu0 0
  %937 = vmatprep.subr.bf16.mxu0 0
  %938 = vmatpush1.bf16.xpose.msra.mxu0 0
  %939 = vmatprep.subr.bf16.mxu0 0
  %940 = vmatpush1.bf16.xpose.msra.mxu0 0
  %941 = vmatprep.subr.bf16.mxu0 0
  %942 = vmatpush1.bf16.xpose.msra.mxu0 0
  %943 = vmatprep.subr.bf16.mxu0 0
  %944 = vmatpush1.bf16.xpose.msra.mxu0 0
  %945 = vmatprep.mubr.bf16.mxu0 0
  %946 = vmatmul.mubr.bf16.gmra.mrb[0].mxu0 %v616
  %v947 = vpop.f32.mrb[0].mxu0
  %v948 = vadd.f32 0.0, %v947
  %v949 = vpop.f32.mrb[0].mxu0
  %v950 = vpop.f32.mrb[0].mxu0
  %v951 = vpop.f32.mrb[0].mxu0
  %952 = vdwg.mxu0
  %953 = vmatprep.subr.bf16.mxu0 0
  %954 = vmatpush1.bf16.xpose.msra.mxu0 %v625
  %955 = vmatprep.subr.bf16.mxu0 0
  %956 = vmatpush1.bf16.xpose.msra.mxu0 0
  %957 = vmatprep.subr.bf16.mxu0 0
  %958 = vmatpush1.bf16.xpose.msra.mxu0 0
  %959 = vmatprep.subr.bf16.mxu0 0
  %960 = vmatpush1.bf16.xpose.msra.mxu0 0
  %961 = vmatprep.subr.bf16.mxu0 0
  %962 = vmatpush1.bf16.xpose.msra.mxu0 0
  %963 = vmatprep.subr.bf16.mxu0 0
  %964 = vmatpush1.bf16.xpose.msra.mxu0 0
  %965 = vmatprep.subr.bf16.mxu0 0
  %966 = vmatpush1.bf16.xpose.msra.mxu0 0
  %967 = vmatprep.subr.bf16.mxu0 0
  %968 = vmatpush1.bf16.xpose.msra.mxu0 0
  %969 = vmatprep.subr.bf16.mxu0 0
  %970 = vmatpush1.bf16.xpose.msra.mxu0 0
  %971 = vmatprep.subr.bf16.mxu0 0
  %972 = vmatpush1.bf16.xpose.msra.mxu0 0
  %973 = vmatprep.subr.bf16.mxu0 0
  %974 = vmatpush1.bf16.xpose.msra.mxu0 0
  %975 = vmatprep.subr.bf16.mxu0 0
  %976 = vmatpush1.bf16.xpose.msra.mxu0 0
  %977 = vmatprep.subr.bf16.mxu0 0
  %978 = vmatpush1.bf16.xpose.msra.mxu0 0
  %979 = vmatprep.subr.bf16.mxu0 0
  %980 = vmatpush1.bf16.xpose.msra.mxu0 0
  %981 = vmatprep.subr.bf16.mxu0 0
  %982 = vmatpush1.bf16.xpose.msra.mxu0 0
  %983 = vmatprep.subr.bf16.mxu0 0
  %984 = vmatpush1.bf16.xpose.msra.mxu0 0
  %985 = vmatprep.mubr.bf16.mxu0 0
  %986 = vmatmul.mubr.bf16.gmra.mrb[0].mxu0 %v615
  %v987 = vpop.f32.mrb[0].mxu0
  %v988 = vadd.f32 0.0, %v987
  %v989 = vpop.f32.mrb[0].mxu0
  %v990 = vpop.f32.mrb[0].mxu0
  %v991 = vpop.f32.mrb[0].mxu0
  %992 = vdwg.mxu0
  %993 = vmatprep.subr.bf16.mxu0 0
  %994 = vmatpush1.bf16.xpose.msra.mxu0 %v626
  %995 = vmatprep.subr.bf16.mxu0 0
  %996 = vmatpush1.bf16.xpose.msra.mxu0 0
  %997 = vmatprep.subr.bf16.mxu0 0
  %998 = vmatpush1.bf16.xpose.msra.mxu0 0
  %999 = vmatprep.subr.bf16.mxu0 0
  %1000 = vmatpush1.bf16.xpose.msra.mxu0 0
  %1001 = vmatprep.subr.bf16.mxu0 0
  %1002 = vmatpush1.bf16.xpose.msra.mxu0 0
  %1003 = vmatprep.subr.bf16.mxu0 0
  %1004 = vmatpush1.bf16.xpose.msra.mxu0 0
  %1005 = vmatprep.subr.bf16.mxu0 0
  %1006 = vmatpush1.bf16.xpose.msra.mxu0 0
  %1007 = vmatprep.subr.bf16.mxu0 0
  %1008 = vmatpush1.bf16.xpose.msra.mxu0 0
  %1009 = vmatprep.subr.bf16.mxu0 0
  %1010 = vmatpush1.bf16.xpose.msra.mxu0 0
  %1011 = vmatprep.subr.bf16.mxu0 0
  %1012 = vmatpush1.bf16.xpose.msra.mxu0 0
  %1013 = vmatprep.subr.bf16.mxu0 0
  %1014 = vmatpush1.bf16.xpose.msra.mxu0 0
  %1015 = vmatprep.subr.bf16.mxu0 0
  %1016 = vmatpush1.bf16.xpose.msra.mxu0 0
  %1017 = vmatprep.subr.bf16.mxu0 0
  %1018 = vmatpush1.bf16.xpose.msra.mxu0 0
  %1019 = vmatprep.subr.bf16.mxu0 0
  %1020 = vmatpush1.bf16.xpose.msra.mxu0 0
  %1021 = vmatprep.subr.bf16.mxu0 0
  %1022 = vmatpush1.bf16.xpose.msra.mxu0 0
  %1023 = vmatprep.subr.bf16.mxu0 0
  %1024 = vmatpush1.bf16.xpose.msra.mxu0 0
  %1025 = vmatprep.mubr.bf16.mxu0 0
  %1026 = vmatmul.mubr.bf16.gmra.mrb[0].mxu0 %v616
  %v1027 = vpop.f32.mrb[0].mxu0
  %v1028 = vadd.f32 0.0, %v1027
  %v1029 = vpop.f32.mrb[0].mxu0
  %v1030 = vpop.f32.mrb[0].mxu0
  %v1031 = vpop.f32.mrb[0].mxu0
  %1032 = vdwg.mxu0
  %1033 = vmatprep.subr.bf16.mxu0 0
  %1034 = vmatpush1.bf16.xpose.msra.mxu0 %v627
  %1035 = vmatprep.subr.bf16.mxu0 0
  %1036 = vmatpush1.bf16.xpose.msra.mxu0 0
  %1037 = vmatprep.subr.bf16.mxu0 0
  %1038 = vmatpush1.bf16.xpose.msra.mxu0 0
  %1039 = vmatprep.subr.bf16.mxu0 0
  %1040 = vmatpush1.bf16.xpose.msra.mxu0 0
  %1041 = vmatprep.subr.bf16.mxu0 0
  %1042 = vmatpush1.bf16.xpose.msra.mxu0 0
  %1043 = vmatprep.subr.bf16.mxu0 0
  %1044 = vmatpush1.bf16.xpose.msra.mxu0 0
  %1045 = vmatprep.subr.bf16.mxu0 0
  %1046 = vmatpush1.bf16.xpose.msra.mxu0 0
  %1047 = vmatprep.subr.bf16.mxu0 0
  %1048 = vmatpush1.bf16.xpose.msra.mxu0 0
  %1049 = vmatprep.subr.bf16.mxu0 0
  %1050 = vmatpush1.bf16.xpose.msra.mxu0 0
  %1051 = vmatprep.subr.bf16.mxu0 0
  %1052 = vmatpush1.bf16.xpose.msra.mxu0 0
  %1053 = vmatprep.subr.bf16.mxu0 0
  %1054 = vmatpush1.bf16.xpose.msra.mxu0 0
  %1055 = vmatprep.subr.bf16.mxu0 0
  %1056 = vmatpush1.bf16.xpose.msra.mxu0 0
  %1057 = vmatprep.subr.bf16.mxu0 0
  %1058 = vmatpush1.bf16.xpose.msra.mxu0 0
  %1059 = vmatprep.subr.bf16.mxu0 0
  %1060 = vmatpush1.bf16.xpose.msra.mxu0 0
  %1061 = vmatprep.subr.bf16.mxu0 0
  %1062 = vmatpush1.bf16.xpose.msra.mxu0 0
  %1063 = vmatprep.subr.bf16.mxu0 0
  %1064 = vmatpush1.bf16.xpose.msra.mxu0 0
  %1065 = vmatprep.mubr.bf16.mxu0 0
  %1066 = vmatmul.mubr.bf16.gmra.mrb[0].mxu0 %v615
  %v1067 = vpop.f32.mrb[0].mxu0
  %v1068 = vadd.f32 0.0, %v1067
  %v1069 = vpop.f32.mrb[0].mxu0
  %v1070 = vpop.f32.mrb[0].mxu0
  %v1071 = vpop.f32.mrb[0].mxu0
  %1072 = vdwg.mxu0
  %1073 = vmatprep.subr.bf16.mxu0 0
  %1074 = vmatpush1.bf16.xpose.msra.mxu0 %v628
  %1075 = vmatprep.subr.bf16.mxu0 0
  %1076 = vmatpush1.bf16.xpose.msra.mxu0 0
  %1077 = vmatprep.subr.bf16.mxu0 0
  %1078 = vmatpush1.bf16.xpose.msra.mxu0 0
  %1079 = vmatprep.subr.bf16.mxu0 0
  %1080 = vmatpush1.bf16.xpose.msra.mxu0 0
  %1081 = vmatprep.subr.bf16.mxu0 0
  %1082 = vmatpush1.bf16.xpose.msra.mxu0 0
  %1083 = vmatprep.subr.bf16.mxu0 0
  %1084 = vmatpush1.bf16.xpose.msra.mxu0 0
  %1085 = vmatprep.subr.bf16.mxu0 0
  %1086 = vmatpush1.bf16.xpose.msra.mxu0 0
  %1087 = vmatprep.subr.bf16.mxu0 0
  %1088 = vmatpush1.bf16.xpose.msra.mxu0 0
  %1089 = vmatprep.subr.bf16.mxu0 0
  %1090 = vmatpush1.bf16.xpose.msra.mxu0 0
  %1091 = vmatprep.subr.bf16.mxu0 0
  %1092 = vmatpush1.bf16.xpose.msra.mxu0 0
  %1093 = vmatprep.subr.bf16.mxu0 0
  %1094 = vmatpush1.bf16.xpose.msra.mxu0 0
  %1095 = vmatprep.subr.bf16.mxu0 0
  %1096 = vmatpush1.bf16.xpose.msra.mxu0 0
  %1097 = vmatprep.subr.bf16.mxu0 0
  %1098 = vmatpush1.bf16.xpose.msra.mxu0 0
  %1099 = vmatprep.subr.bf16.mxu0 0
  %1100 = vmatpush1.bf16.xpose.msra.mxu0 0
  %1101 = vmatprep.subr.bf16.mxu0 0
  %1102 = vmatpush1.bf16.xpose.msra.mxu0 0
  %1103 = vmatprep.subr.bf16.mxu0 0
  %1104 = vmatpush1.bf16.xpose.msra.mxu0 0
  %1105 = vmatprep.mubr.bf16.mxu0 0
  %1106 = vmatmul.mubr.bf16.gmra.mrb[0].mxu0 %v616
  %v1107 = vpop.f32.mrb[0].mxu0
  %v1108 = vadd.f32 0.0, %v1107
  %v1109 = vpop.f32.mrb[0].mxu0
  %v1110 = vpop.f32.mrb[0].mxu0
  %v1111 = vpop.f32.mrb[0].mxu0
  %1112 = vdwg.mxu0
  %1113 = vmatprep.subr.bf16.mxu0 0
  %1114 = vmatpush1.bf16.xpose.msra.mxu0 %v629
  %1115 = vmatprep.subr.bf16.mxu0 0
  %1116 = vmatpush1.bf16.xpose.msra.mxu0 0
  %1117 = vmatprep.subr.bf16.mxu0 0
  %1118 = vmatpush1.bf16.xpose.msra.mxu0 0
  %1119 = vmatprep.subr.bf16.mxu0 0
  %1120 = vmatpush1.bf16.xpose.msra.mxu0 0
  %1121 = vmatprep.subr.bf16.mxu0 0
  %1122 = vmatpush1.bf16.xpose.msra.mxu0 0
  %1123 = vmatprep.subr.bf16.mxu0 0
  %1124 = vmatpush1.bf16.xpose.msra.mxu0 0
  %1125 = vmatprep.subr.bf16.mxu0 0
  %1126 = vmatpush1.bf16.xpose.msra.mxu0 0
  %1127 = vmatprep.subr.bf16.mxu0 0
  %1128 = vmatpush1.bf16.xpose.msra.mxu0 0
  %1129 = vmatprep.subr.bf16.mxu0 0
  %1130 = vmatpush1.bf16.xpose.msra.mxu0 0
  %1131 = vmatprep.subr.bf16.mxu0 0
  %1132 = vmatpush1.bf16.xpose.msra.mxu0 0
  %1133 = vmatprep.subr.bf16.mxu0 0
  %1134 = vmatpush1.bf16.xpose.msra.mxu0 0
  %1135 = vmatprep.subr.bf16.mxu0 0
  %1136 = vmatpush1.bf16.xpose.msra.mxu0 0
  %1137 = vmatprep.subr.bf16.mxu0 0
  %1138 = vmatpush1.bf16.xpose.msra.mxu0 0
  %1139 = vmatprep.subr.bf16.mxu0 0
  %1140 = vmatpush1.bf16.xpose.msra.mxu0 0
  %1141 = vmatprep.subr.bf16.mxu0 0
  %1142 = vmatpush1.bf16.xpose.msra.mxu0 0
  %1143 = vmatprep.subr.bf16.mxu0 0
  %1144 = vmatpush1.bf16.xpose.msra.mxu0 0
  %1145 = vmatprep.mubr.bf16.mxu0 0
  %1146 = vmatmul.mubr.bf16.gmra.mrb[0].mxu0 %v615
  %v1147 = vpop.f32.mrb[0].mxu0
  %v1148 = vadd.f32 0.0, %v1147
  %v1149 = vpop.f32.mrb[0].mxu0
  %v1150 = vpop.f32.mrb[0].mxu0
  %v1151 = vpop.f32.mrb[0].mxu0
  %1152 = vdwg.mxu0
  %1153 = vmatprep.subr.bf16.mxu0 0
  %1154 = vmatpush1.bf16.xpose.msra.mxu0 %v630
  %1155 = vmatprep.subr.bf16.mxu0 0
  %1156 = vmatpush1.bf16.xpose.msra.mxu0 0
  %1157 = vmatprep.subr.bf16.mxu0 0
  %1158 = vmatpush1.bf16.xpose.msra.mxu0 0
  %1159 = vmatprep.subr.bf16.mxu0 0
  %1160 = vmatpush1.bf16.xpose.msra.mxu0 0
  %1161 = vmatprep.subr.bf16.mxu0 0
  %1162 = vmatpush1.bf16.xpose.msra.mxu0 0
  %1163 = vmatprep.subr.bf16.mxu0 0
  %1164 = vmatpush1.bf16.xpose.msra.mxu0 0
  %1165 = vmatprep.subr.bf16.mxu0 0
  %1166 = vmatpush1.bf16.xpose.msra.mxu0 0
  %1167 = vmatprep.subr.bf16.mxu0 0
  %1168 = vmatpush1.bf16.xpose.msra.mxu0 0
  %1169 = vmatprep.subr.bf16.mxu0 0
  %1170 = vmatpush1.bf16.xpose.msra.mxu0 0
  %1171 = vmatprep.subr.bf16.mxu0 0
  %1172 = vmatpush1.bf16.xpose.msra.mxu0 0
  %1173 = vmatprep.subr.bf16.mxu0 0
  %1174 = vmatpush1.bf16.xpose.msra.mxu0 0
  %1175 = vmatprep.subr.bf16.mxu0 0
  %1176 = vmatpush1.bf16.xpose.msra.mxu0 0
  %1177 = vmatprep.subr.bf16.mxu0 0
  %1178 = vmatpush1.bf16.xpose.msra.mxu0 0
  %1179 = vmatprep.subr.bf16.mxu0 0
  %1180 = vmatpush1.bf16.xpose.msra.mxu0 0
  %1181 = vmatprep.subr.bf16.mxu0 0
  %1182 = vmatpush1.bf16.xpose.msra.mxu0 0
  %1183 = vmatprep.subr.bf16.mxu0 0
  %1184 = vmatpush1.bf16.xpose.msra.mxu0 0
  %1185 = vmatprep.mubr.bf16.mxu0 0
  %1186 = vmatmul.mubr.bf16.gmra.mrb[0].mxu0 %v616
  %v1187 = vpop.f32.mrb[0].mxu0
  %v1188 = vadd.f32 0.0, %v1187
  %v1189 = vpop.f32.mrb[0].mxu0
  %v1190 = vpop.f32.mrb[0].mxu0
  %v1191 = vpop.f32.mrb[0].mxu0
  %1192 = vdwg.mxu0
  %1193 = vmatprep.subr.bf16.mxu0 0
  %1194 = vmatpush1.bf16.xpose.msra.mxu0 %v631
  %1195 = vmatprep.subr.bf16.mxu0 0
  %1196 = vmatpush1.bf16.xpose.msra.mxu0 0
  %1197 = vmatprep.subr.bf16.mxu0 0
  %1198 = vmatpush1.bf16.xpose.msra.mxu0 0
  %1199 = vmatprep.subr.bf16.mxu0 0
  %1200 = vmatpush1.bf16.xpose.msra.mxu0 0
  %1201 = vmatprep.subr.bf16.mxu0 0
  %1202 = vmatpush1.bf16.xpose.msra.mxu0 0
  %1203 = vmatprep.subr.bf16.mxu0 0
  %1204 = vmatpush1.bf16.xpose.msra.mxu0 0
  %1205 = vmatprep.subr.bf16.mxu0 0
  %1206 = vmatpush1.bf16.xpose.msra.mxu0 0
  %1207 = vmatprep.subr.bf16.mxu0 0
  %1208 = vmatpush1.bf16.xpose.msra.mxu0 0
  %1209 = vmatprep.subr.bf16.mxu0 0
  %1210 = vmatpush1.bf16.xpose.msra.mxu0 0
  %1211 = vmatprep.subr.bf16.mxu0 0
  %1212 = vmatpush1.bf16.xpose.msra.mxu0 0
  %1213 = vmatprep.subr.bf16.mxu0 0
  %1214 = vmatpush1.bf16.xpose.msra.mxu0 0
  %1215 = vmatprep.subr.bf16.mxu0 0
  %1216 = vmatpush1.bf16.xpose.msra.mxu0 0
  %1217 = vmatprep.subr.bf16.mxu0 0
  %1218 = vmatpush1.bf16.xpose.msra.mxu0 0
  %1219 = vmatprep.subr.bf16.mxu0 0
  %1220 = vmatpush1.bf16.xpose.msra.mxu0 0
  %1221 = vmatprep.subr.bf16.mxu0 0
  %1222 = vmatpush1.bf16.xpose.msra.mxu0 0
  %1223 = vmatprep.subr.bf16.mxu0 0
  %1224 = vmatpush1.bf16.xpose.msra.mxu0 0
  %1225 = vmatprep.mubr.bf16.mxu0 0
  %1226 = vmatmul.mubr.bf16.gmra.mrb[0].mxu0 %v615
  %v1227 = vpop.f32.mrb[0].mxu0
  %v1228 = vadd.f32 0.0, %v1227
  %v1229 = vpop.f32.mrb[0].mxu0
  %v1230 = vpop.f32.mrb[0].mxu0
  %v1231 = vpop.f32.mrb[0].mxu0
  %1232 = vdwg.mxu0
  %1233 = vmatprep.subr.bf16.mxu0 0
  %1234 = vmatpush1.bf16.xpose.msra.mxu0 %v632
  %1235 = vmatprep.subr.bf16.mxu0 0
  %1236 = vmatpush1.bf16.xpose.msra.mxu0 0
  %1237 = vmatprep.subr.bf16.mxu0 0
  %1238 = vmatpush1.bf16.xpose.msra.mxu0 0
  %1239 = vmatprep.subr.bf16.mxu0 0
  %1240 = vmatpush1.bf16.xpose.msra.mxu0 0
  %1241 = vmatprep.subr.bf16.mxu0 0
  %1242 = vmatpush1.bf16.xpose.msra.mxu0 0
  %1243 = vmatprep.subr.bf16.mxu0 0
  %1244 = vmatpush1.bf16.xpose.msra.mxu0 0
  %1245 = vmatprep.subr.bf16.mxu0 0
  %1246 = vmatpush1.bf16.xpose.msra.mxu0 0
  %1247 = vmatprep.subr.bf16.mxu0 0
  %1248 = vmatpush1.bf16.xpose.msra.mxu0 0
  %1249 = vmatprep.subr.bf16.mxu0 0
  %1250 = vmatpush1.bf16.xpose.msra.mxu0 0
  %1251 = vmatprep.subr.bf16.mxu0 0
  %1252 = vmatpush1.bf16.xpose.msra.mxu0 0
  %1253 = vmatprep.subr.bf16.mxu0 0
  %1254 = vmatpush1.bf16.xpose.msra.mxu0 0
  %1255 = vmatprep.subr.bf16.mxu0 0
  %1256 = vmatpush1.bf16.xpose.msra.mxu0 0
  %1257 = vmatprep.subr.bf16.mxu0 0
  %1258 = vmatpush1.bf16.xpose.msra.mxu0 0
  %1259 = vmatprep.subr.bf16.mxu0 0
  %1260 = vmatpush1.bf16.xpose.msra.mxu0 0
  %1261 = vmatprep.subr.bf16.mxu0 0
  %1262 = vmatpush1.bf16.xpose.msra.mxu0 0
  %1263 = vmatprep.subr.bf16.mxu0 0
  %1264 = vmatpush1.bf16.xpose.msra.mxu0 0
  %1265 = vmatprep.mubr.bf16.mxu0 0
  %1266 = vmatmul.mubr.bf16.gmra.mrb[0].mxu0 %v616
  %v1267 = vpop.f32.mrb[0].mxu0
  %v1268 = vadd.f32 0.0, %v1267
  %v1269 = vpop.f32.mrb[0].mxu0
  %v1270 = vpop.f32.mrb[0].mxu0
  %v1271 = vpop.f32.mrb[0].mxu0
  %1272 = vdwg.mxu0
  %v1273 = vmul.f32 %v668, 0.25
  %v1274 = vmul.f32 %v708, 0.25
  %v1275 = vmul.f32 %v748, 0.25
  %v1276 = vmul.f32 %v788, 0.25
  %v1277 = vmul.f32 %v828, 0.25
  %v1278 = vmul.f32 %v868, 0.25
  %v1279 = vmul.f32 %v908, 0.25
  %v1280 = vmul.f32 %v948, 0.25
  %v1281 = vmul.f32 %v988, 0.25
  %v1282 = vmul.f32 %v1028, 0.25
  %v1283 = vmul.f32 %v1068, 0.25
  %v1284 = vmul.f32 %v1108, 0.25
  %v1285 = vmul.f32 %v1148, 0.25
  %v1286 = vmul.f32 %v1188, 0.25
  %v1287 = vmul.f32 %v1228, 0.25
  %v1288 = vmul.f32 %v1268, 0.25
  %vm1289 = vcmask 9216
  %v1290 = vsel %vm1289, %v1273, -inf
  %1291 = vmax.xlane.f32.xlu0 %v1290
  %v1292 = vpop.xlane.xlu0 %1291
  %v1293 = vsel %vm1289, %v1274, -inf
  %1294 = vmax.xlane.f32.xlu0 %v1293
  %v1295 = vpop.xlane.xlu0 %1294
  %v1296 = vsel %vm1289, %v1275, -inf
  %1297 = vmax.xlane.f32.xlu0 %v1296
  %v1298 = vpop.xlane.xlu0 %1297
  %v1299 = vsel %vm1289, %v1276, -inf
  %1300 = vmax.xlane.f32.xlu0 %v1299
  %v1301 = vpop.xlane.xlu0 %1300
  %v1302 = vsel %vm1289, %v1277, -inf
  %1303 = vmax.xlane.f32.xlu0 %v1302
  %v1304 = vpop.xlane.xlu0 %1303
  %v1305 = vsel %vm1289, %v1278, -inf
  %1306 = vmax.xlane.f32.xlu0 %v1305
  %v1307 = vpop.xlane.xlu0 %1306
  %v1308 = vsel %vm1289, %v1279, -inf
  %1309 = vmax.xlane.f32.xlu0 %v1308
  %v1310 = vpop.xlane.xlu0 %1309
  %v1311 = vsel %vm1289, %v1280, -inf
  %1312 = vmax.xlane.f32.xlu0 %v1311
  %v1313 = vpop.xlane.xlu0 %1312
  %v1314 = vsel %vm1289, %v1281, -inf
  %1315 = vmax.xlane.f32.xlu0 %v1314
  %v1316 = vpop.xlane.xlu0 %1315
  %v1317 = vsel %vm1289, %v1282, -inf
  %1318 = vmax.xlane.f32.xlu0 %v1317
  %v1319 = vpop.xlane.xlu0 %1318
  %v1320 = vsel %vm1289, %v1283, -inf
  %1321 = vmax.xlane.f32.xlu0 %v1320
  %v1322 = vpop.xlane.xlu0 %1321
  %v1323 = vsel %vm1289, %v1284, -inf
  %1324 = vmax.xlane.f32.xlu0 %v1323
  %v1325 = vpop.xlane.xlu0 %1324
  %v1326 = vsel %vm1289, %v1285, -inf
  %1327 = vmax.xlane.f32.xlu0 %v1326
  %v1328 = vpop.xlane.xlu0 %1327
  %v1329 = vsel %vm1289, %v1286, -inf
  %1330 = vmax.xlane.f32.xlu0 %v1329
  %v1331 = vpop.xlane.xlu0 %1330
  %v1332 = vsel %vm1289, %v1287, -inf
  %1333 = vmax.xlane.f32.xlu0 %v1332
  %v1334 = vpop.xlane.xlu0 %1333
  %v1335 = vsel %vm1289, %v1288, -inf
  %1336 = vmax.xlane.f32.xlu0 %v1335
  %v1337 = vpop.xlane.xlu0 %1336
  %v1338 = vsub.f32 %v1273, %v1292
  %v1339 = vsub.f32 %v1274, %v1295
  %v1340 = vsub.f32 %v1275, %v1298
  %v1341 = vsub.f32 %v1276, %v1301
  %v1342 = vsub.f32 %v1277, %v1304
  %v1343 = vsub.f32 %v1278, %v1307
  %v1344 = vsub.f32 %v1279, %v1310
  %v1345 = vsub.f32 %v1280, %v1313
  %v1346 = vsub.f32 %v1281, %v1316
  %v1347 = vsub.f32 %v1282, %v1319
  %v1348 = vsub.f32 %v1283, %v1322
  %v1349 = vsub.f32 %v1284, %v1325
  %v1350 = vsub.f32 %v1285, %v1328
  %v1351 = vsub.f32 %v1286, %v1331
  %v1352 = vsub.f32 %v1287, %v1334
  %v1353 = vsub.f32 %v1288, %v1337
  %v1354 = vmul.f32 %v1338, 1.442695
  %v1355 = vpow.pop %v1354
  %v1356 = vmul.f32 %v1339, 1.442695
  %v1357 = vpow.pop %v1356
  %v1358 = vmul.f32 %v1340, 1.442695
  %v1359 = vpow.pop %v1358
  %v1360 = vmul.f32 %v1341, 1.442695
  %v1361 = vpow.pop %v1360
  %v1362 = vmul.f32 %v1342, 1.442695
  %v1363 = vpow.pop %v1362
  %v1364 = vmul.f32 %v1343, 1.442695
  %v1365 = vpow.pop %v1364
  %v1366 = vmul.f32 %v1344, 1.442695
  %v1367 = vpow.pop %v1366
  %v1368 = vmul.f32 %v1345, 1.442695
  %v1369 = vpow.pop %v1368
  %v1370 = vmul.f32 %v1346, 1.442695
  %v1371 = vpow.pop %v1370
  %v1372 = vmul.f32 %v1347, 1.442695
  %v1373 = vpow.pop %v1372
  %v1374 = vmul.f32 %v1348, 1.442695
  %v1375 = vpow.pop %v1374
  %v1376 = vmul.f32 %v1349, 1.442695
  %v1377 = vpow.pop %v1376
  %v1378 = vmul.f32 %v1350, 1.442695
  %v1379 = vpow.pop %v1378
  %v1380 = vmul.f32 %v1351, 1.442695
  %v1381 = vpow.pop %v1380
  %v1382 = vmul.f32 %v1352, 1.442695
  %v1383 = vpow.pop %v1382
  %v1384 = vmul.f32 %v1353, 1.442695
  %v1385 = vpow.pop %v1384
  %v1386 = vsel %vm1289, %v1355, 0.0
  %1387 = vadd.xlane.f32.xlu0 %v1386
  %v1388 = vpop.xlane.xlu0 %1387
  %v1389 = vsel %vm1289, %v1357, 0.0
  %1390 = vadd.xlane.f32.xlu0 %v1389
  %v1391 = vpop.xlane.xlu0 %1390
  %v1392 = vsel %vm1289, %v1359, 0.0
  %1393 = vadd.xlane.f32.xlu0 %v1392
  %v1394 = vpop.xlane.xlu0 %1393
  %v1395 = vsel %vm1289, %v1361, 0.0
  %1396 = vadd.xlane.f32.xlu0 %v1395
  %v1397 = vpop.xlane.xlu0 %1396
  %v1398 = vsel %vm1289, %v1363, 0.0
  %1399 = vadd.xlane.f32.xlu0 %v1398
  %v1400 = vpop.xlane.xlu0 %1399
  %v1401 = vsel %vm1289, %v1365, 0.0
  %1402 = vadd.xlane.f32.xlu0 %v1401
  %v1403 = vpop.xlane.xlu0 %1402
  %v1404 = vsel %vm1289, %v1367, 0.0
  %1405 = vadd.xlane.f32.xlu0 %v1404
  %v1406 = vpop.xlane.xlu0 %1405
  %v1407 = vsel %vm1289, %v1369, 0.0
  %1408 = vadd.xlane.f32.xlu0 %v1407
  %v1409 = vpop.xlane.xlu0 %1408
  %v1410 = vsel %vm1289, %v1371, 0.0
  %1411 = vadd.xlane.f32.xlu0 %v1410
  %v1412 = vpop.xlane.xlu0 %1411
  %v1413 = vsel %vm1289, %v1373, 0.0
  %1414 = vadd.xlane.f32.xlu0 %v1413
  %v1415 = vpop.xlane.xlu0 %1414
  %v1416 = vsel %vm1289, %v1375, 0.0
  %1417 = vadd.xlane.f32.xlu0 %v1416
  %v1418 = vpop.xlane.xlu0 %1417
  %v1419 = vsel %vm1289, %v1377, 0.0
  %1420 = vadd.xlane.f32.xlu0 %v1419
  %v1421 = vpop.xlane.xlu0 %1420
  %v1422 = vsel %vm1289, %v1379, 0.0
  %1423 = vadd.xlane.f32.xlu0 %v1422
  %v1424 = vpop.xlane.xlu0 %1423
  %v1425 = vsel %vm1289, %v1381, 0.0
  %1426 = vadd.xlane.f32.xlu0 %v1425
  %v1427 = vpop.xlane.xlu0 %1426
  %v1428 = vsel %vm1289, %v1383, 0.0
  %1429 = vadd.xlane.f32.xlu0 %v1428
  %v1430 = vpop.xlane.xlu0 %1429
  %v1431 = vsel %vm1289, %v1385, 0.0
  %1432 = vadd.xlane.f32.xlu0 %v1431
  %v1433 = vpop.xlane.xlu0 %1432
  %v1434 = vrcp.pop %v1388
  %v1435 = vrcp.pop %v1391
  %v1436 = vrcp.pop %v1394
  %v1437 = vrcp.pop %v1397
  %v1438 = vrcp.pop %v1400
  %v1439 = vrcp.pop %v1403
  %v1440 = vrcp.pop %v1406
  %v1441 = vrcp.pop %v1409
  %v1442 = vrcp.pop %v1412
  %v1443 = vrcp.pop %v1415
  %v1444 = vrcp.pop %v1418
  %v1445 = vrcp.pop %v1421
  %v1446 = vrcp.pop %v1424
  %v1447 = vrcp.pop %v1427
  %v1448 = vrcp.pop %v1430
  %v1449 = vrcp.pop %v1433
  %v1450 = vmul.f32 %v1355, %v1434
  %v1451 = vmul.f32 %v1357, %v1435
  %v1452 = vmul.f32 %v1359, %v1436
  %v1453 = vmul.f32 %v1361, %v1437
  %v1454 = vmul.f32 %v1363, %v1438
  %v1455 = vmul.f32 %v1365, %v1439
  %v1456 = vmul.f32 %v1367, %v1440
  %v1457 = vmul.f32 %v1369, %v1441
  %v1458 = vmul.f32 %v1371, %v1442
  %v1459 = vmul.f32 %v1373, %v1443
  %v1460 = vmul.f32 %v1375, %v1444
  %v1461 = vmul.f32 %v1377, %v1445
  %v1462 = vmul.f32 %v1379, %v1446
  %v1463 = vmul.f32 %v1381, %v1447
  %v1464 = vmul.f32 %v1383, %v1448
  %v1465 = vmul.f32 %v1385, %v1449
  %v1466 = vpack.c.bf16 %v1450, %v1450
  %v1467 = vpack.c.bf16 %v1451, %v1451
  %v1468 = vpack.c.bf16 %v1452, %v1452
  %v1469 = vpack.c.bf16 %v1453, %v1453
  %v1470 = vpack.c.bf16 %v1454, %v1454
  %v1471 = vpack.c.bf16 %v1455, %v1455
  %v1472 = vpack.c.bf16 %v1456, %v1456
  %v1473 = vpack.c.bf16 %v1457, %v1457
  %v1474 = vpack.c.bf16 %v1458, %v1458
  %v1475 = vpack.c.bf16 %v1459, %v1459
  %v1476 = vpack.c.bf16 %v1460, %v1460
  %v1477 = vpack.c.bf16 %v1461, %v1461
  %v1478 = vpack.c.bf16 %v1462, %v1462
  %v1479 = vpack.c.bf16 %v1463, %v1463
  %v1480 = vpack.c.bf16 %v1464, %v1464
  %v1481 = vpack.c.bf16 %v1465, %v1465
  %v1482 = vpack.c.bf16 %v599, %v599
  %v1483 = vpack.c.bf16 %v600, %v600
  %v1484 = vpack.c.bf16 %v601, %v601
  %v1485 = vpack.c.bf16 %v602, %v602
  %v1486 = vpack.c.bf16 %v603, %v603
  %v1487 = vpack.c.bf16 %v604, %v604
  %v1488 = vpack.c.bf16 %v605, %v605
  %v1489 = vpack.c.bf16 %v606, %v606
  %v1490 = vpack.c.bf16 %v607, %v607
  %v1491 = vpack.c.bf16 %v608, %v608
  %v1492 = vpack.c.bf16 %v609, %v609
  %v1493 = vpack.c.bf16 %v610, %v610
  %v1494 = vpack.c.bf16 %v611, %v611
  %v1495 = vpack.c.bf16 %v612, %v612
  %v1496 = vpack.c.bf16 %v613, %v613
  %v1497 = vpack.c.bf16 %v614, %v614
  %vm1498 = vcmask 15360
  %v1500 = vsel %vm1498, %v1466, 0
  %vm1502 = vcmask 1040384
  %v1504 = vsel %vm1502, %v1482, 0
  %1506 = vmatprep.subr.bf16.mxu0 0
  %1507 = vmatpush1.bf16.msra.mxu0 %v1504
  %1508 = vmatprep.subr.bf16.mxu0 0
  %1509 = vmatpush1.bf16.msra.mxu0 0
  %1510 = vmatprep.subr.bf16.mxu0 0
  %1511 = vmatpush1.bf16.msra.mxu0 0
  %1512 = vmatprep.subr.bf16.mxu0 0
  %1513 = vmatpush1.bf16.msra.mxu0 0
  %1514 = vmatprep.subr.bf16.mxu0 0
  %1515 = vmatpush1.bf16.msra.mxu0 0
  %1516 = vmatprep.subr.bf16.mxu0 0
  %1517 = vmatpush1.bf16.msra.mxu0 0
  %1518 = vmatprep.subr.bf16.mxu0 0
  %1519 = vmatpush1.bf16.msra.mxu0 0
  %1520 = vmatprep.subr.bf16.mxu0 0
  %1521 = vmatpush1.bf16.msra.mxu0 0
  %1522 = vmatprep.subr.bf16.mxu0 0
  %1523 = vmatpush1.bf16.msra.mxu0 0
  %1524 = vmatprep.subr.bf16.mxu0 0
  %1525 = vmatpush1.bf16.msra.mxu0 0
  %1526 = vmatprep.subr.bf16.mxu0 0
  %1527 = vmatpush1.bf16.msra.mxu0 0
  %1528 = vmatprep.subr.bf16.mxu0 0
  %1529 = vmatpush1.bf16.msra.mxu0 0
  %1530 = vmatprep.subr.bf16.mxu0 0
  %1531 = vmatpush1.bf16.msra.mxu0 0
  %1532 = vmatprep.subr.bf16.mxu0 0
  %1533 = vmatpush1.bf16.msra.mxu0 0
  %1534 = vmatprep.subr.bf16.mxu0 0
  %1535 = vmatpush1.bf16.msra.mxu0 0
  %1536 = vmatprep.subr.bf16.mxu0 0
  %1537 = vmatpush1.bf16.msra.mxu0 0
  %1538 = vmatprep.mubr.bf16.mxu0 0
  %1539 = vmatmul.mubr.bf16.gmra.mrb[0].mxu0 %v1500
  %v1540 = vpop.f32.mrb[0].mxu0
  %v1541 = vadd.f32 0.0, %v1540
  %v1542 = vpop.f32.mrb[0].mxu0
  %v1543 = vpop.f32.mrb[0].mxu0
  %v1544 = vpop.f32.mrb[0].mxu0
  %1545 = vdwg.mxu0
  %v1547 = vsel %vm1498, %v1467, 0
  %v1550 = vsel %vm1502, %v1483, 0
  %1552 = vmatprep.subr.bf16.mxu0 0
  %1553 = vmatpush1.bf16.msra.mxu0 %v1550
  %1554 = vmatprep.subr.bf16.mxu0 0
  %1555 = vmatpush1.bf16.msra.mxu0 0
  %1556 = vmatprep.subr.bf16.mxu0 0
  %1557 = vmatpush1.bf16.msra.mxu0 0
  %1558 = vmatprep.subr.bf16.mxu0 0
  %1559 = vmatpush1.bf16.msra.mxu0 0
  %1560 = vmatprep.subr.bf16.mxu0 0
  %1561 = vmatpush1.bf16.msra.mxu0 0
  %1562 = vmatprep.subr.bf16.mxu0 0
  %1563 = vmatpush1.bf16.msra.mxu0 0
  %1564 = vmatprep.subr.bf16.mxu0 0
  %1565 = vmatpush1.bf16.msra.mxu0 0
  %1566 = vmatprep.subr.bf16.mxu0 0
  %1567 = vmatpush1.bf16.msra.mxu0 0
  %1568 = vmatprep.subr.bf16.mxu0 0
  %1569 = vmatpush1.bf16.msra.mxu0 0
  %1570 = vmatprep.subr.bf16.mxu0 0
  %1571 = vmatpush1.bf16.msra.mxu0 0
  %1572 = vmatprep.subr.bf16.mxu0 0
  %1573 = vmatpush1.bf16.msra.mxu0 0
  %1574 = vmatprep.subr.bf16.mxu0 0
  %1575 = vmatpush1.bf16.msra.mxu0 0
  %1576 = vmatprep.subr.bf16.mxu0 0
  %1577 = vmatpush1.bf16.msra.mxu0 0
  %1578 = vmatprep.subr.bf16.mxu0 0
  %1579 = vmatpush1.bf16.msra.mxu0 0
  %1580 = vmatprep.subr.bf16.mxu0 0
  %1581 = vmatpush1.bf16.msra.mxu0 0
  %1582 = vmatprep.subr.bf16.mxu0 0
  %1583 = vmatpush1.bf16.msra.mxu0 0
  %1584 = vmatprep.mubr.bf16.mxu0 0
  %1585 = vmatmul.mubr.bf16.gmra.mrb[0].mxu0 %v1547
  %v1586 = vpop.f32.mrb[0].mxu0
  %v1587 = vadd.f32 0.0, %v1586
  %v1588 = vpop.f32.mrb[0].mxu0
  %v1589 = vpop.f32.mrb[0].mxu0
  %v1590 = vpop.f32.mrb[0].mxu0
  %1591 = vdwg.mxu0
  %v1593 = vsel %vm1498, %v1468, 0
  %v1596 = vsel %vm1502, %v1484, 0
  %1598 = vmatprep.subr.bf16.mxu0 0
  %1599 = vmatpush1.bf16.msra.mxu0 %v1596
  %1600 = vmatprep.subr.bf16.mxu0 0
  %1601 = vmatpush1.bf16.msra.mxu0 0
  %1602 = vmatprep.subr.bf16.mxu0 0
  %1603 = vmatpush1.bf16.msra.mxu0 0
  %1604 = vmatprep.subr.bf16.mxu0 0
  %1605 = vmatpush1.bf16.msra.mxu0 0
  %1606 = vmatprep.subr.bf16.mxu0 0
  %1607 = vmatpush1.bf16.msra.mxu0 0
  %1608 = vmatprep.subr.bf16.mxu0 0
  %1609 = vmatpush1.bf16.msra.mxu0 0
  %1610 = vmatprep.subr.bf16.mxu0 0
  %1611 = vmatpush1.bf16.msra.mxu0 0
  %1612 = vmatprep.subr.bf16.mxu0 0
  %1613 = vmatpush1.bf16.msra.mxu0 0
  %1614 = vmatprep.subr.bf16.mxu0 0
  %1615 = vmatpush1.bf16.msra.mxu0 0
  %1616 = vmatprep.subr.bf16.mxu0 0
  %1617 = vmatpush1.bf16.msra.mxu0 0
  %1618 = vmatprep.subr.bf16.mxu0 0
  %1619 = vmatpush1.bf16.msra.mxu0 0
  %1620 = vmatprep.subr.bf16.mxu0 0
  %1621 = vmatpush1.bf16.msra.mxu0 0
  %1622 = vmatprep.subr.bf16.mxu0 0
  %1623 = vmatpush1.bf16.msra.mxu0 0
  %1624 = vmatprep.subr.bf16.mxu0 0
  %1625 = vmatpush1.bf16.msra.mxu0 0
  %1626 = vmatprep.subr.bf16.mxu0 0
  %1627 = vmatpush1.bf16.msra.mxu0 0
  %1628 = vmatprep.subr.bf16.mxu0 0
  %1629 = vmatpush1.bf16.msra.mxu0 0
  %1630 = vmatprep.mubr.bf16.mxu0 0
  %1631 = vmatmul.mubr.bf16.gmra.mrb[0].mxu0 %v1593
  %v1632 = vpop.f32.mrb[0].mxu0
  %v1633 = vadd.f32 0.0, %v1632
  %v1634 = vpop.f32.mrb[0].mxu0
  %v1635 = vpop.f32.mrb[0].mxu0
  %v1636 = vpop.f32.mrb[0].mxu0
  %1637 = vdwg.mxu0
  %v1639 = vsel %vm1498, %v1469, 0
  %v1642 = vsel %vm1502, %v1485, 0
  %1644 = vmatprep.subr.bf16.mxu0 0
  %1645 = vmatpush1.bf16.msra.mxu0 %v1642
  %1646 = vmatprep.subr.bf16.mxu0 0
  %1647 = vmatpush1.bf16.msra.mxu0 0
  %1648 = vmatprep.subr.bf16.mxu0 0
  %1649 = vmatpush1.bf16.msra.mxu0 0
  %1650 = vmatprep.subr.bf16.mxu0 0
  %1651 = vmatpush1.bf16.msra.mxu0 0
  %1652 = vmatprep.subr.bf16.mxu0 0
  %1653 = vmatpush1.bf16.msra.mxu0 0
  %1654 = vmatprep.subr.bf16.mxu0 0
  %1655 = vmatpush1.bf16.msra.mxu0 0
  %1656 = vmatprep.subr.bf16.mxu0 0
  %1657 = vmatpush1.bf16.msra.mxu0 0
  %1658 = vmatprep.subr.bf16.mxu0 0
  %1659 = vmatpush1.bf16.msra.mxu0 0
  %1660 = vmatprep.subr.bf16.mxu0 0
  %1661 = vmatpush1.bf16.msra.mxu0 0
  %1662 = vmatprep.subr.bf16.mxu0 0
  %1663 = vmatpush1.bf16.msra.mxu0 0
  %1664 = vmatprep.subr.bf16.mxu0 0
  %1665 = vmatpush1.bf16.msra.mxu0 0
  %1666 = vmatprep.subr.bf16.mxu0 0
  %1667 = vmatpush1.bf16.msra.mxu0 0
  %1668 = vmatprep.subr.bf16.mxu0 0
  %1669 = vmatpush1.bf16.msra.mxu0 0
  %1670 = vmatprep.subr.bf16.mxu0 0
  %1671 = vmatpush1.bf16.msra.mxu0 0
  %1672 = vmatprep.subr.bf16.mxu0 0
  %1673 = vmatpush1.bf16.msra.mxu0 0
  %1674 = vmatprep.subr.bf16.mxu0 0
  %1675 = vmatpush1.bf16.msra.mxu0 0
  %1676 = vmatprep.mubr.bf16.mxu0 0
  %1677 = vmatmul.mubr.bf16.gmra.mrb[0].mxu0 %v1639
  %v1678 = vpop.f32.mrb[0].mxu0
  %v1679 = vadd.f32 0.0, %v1678
  %v1680 = vpop.f32.mrb[0].mxu0
  %v1681 = vpop.f32.mrb[0].mxu0
  %v1682 = vpop.f32.mrb[0].mxu0
  %1683 = vdwg.mxu0
  %v1685 = vsel %vm1498, %v1470, 0
  %v1688 = vsel %vm1502, %v1486, 0
  %1690 = vmatprep.subr.bf16.mxu0 0
  %1691 = vmatpush1.bf16.msra.mxu0 %v1688
  %1692 = vmatprep.subr.bf16.mxu0 0
  %1693 = vmatpush1.bf16.msra.mxu0 0
  %1694 = vmatprep.subr.bf16.mxu0 0
  %1695 = vmatpush1.bf16.msra.mxu0 0
  %1696 = vmatprep.subr.bf16.mxu0 0
  %1697 = vmatpush1.bf16.msra.mxu0 0
  %1698 = vmatprep.subr.bf16.mxu0 0
  %1699 = vmatpush1.bf16.msra.mxu0 0
  %1700 = vmatprep.subr.bf16.mxu0 0
  %1701 = vmatpush1.bf16.msra.mxu0 0
  %1702 = vmatprep.subr.bf16.mxu0 0
  %1703 = vmatpush1.bf16.msra.mxu0 0
  %1704 = vmatprep.subr.bf16.mxu0 0
  %1705 = vmatpush1.bf16.msra.mxu0 0
  %1706 = vmatprep.subr.bf16.mxu0 0
  %1707 = vmatpush1.bf16.msra.mxu0 0
  %1708 = vmatprep.subr.bf16.mxu0 0
  %1709 = vmatpush1.bf16.msra.mxu0 0
  %1710 = vmatprep.subr.bf16.mxu0 0
  %1711 = vmatpush1.bf16.msra.mxu0 0
  %1712 = vmatprep.subr.bf16.mxu0 0
  %1713 = vmatpush1.bf16.msra.mxu0 0
  %1714 = vmatprep.subr.bf16.mxu0 0
  %1715 = vmatpush1.bf16.msra.mxu0 0
  %1716 = vmatprep.subr.bf16.mxu0 0
  %1717 = vmatpush1.bf16.msra.mxu0 0
  %1718 = vmatprep.subr.bf16.mxu0 0
  %1719 = vmatpush1.bf16.msra.mxu0 0
  %1720 = vmatprep.subr.bf16.mxu0 0
  %1721 = vmatpush1.bf16.msra.mxu0 0
  %1722 = vmatprep.mubr.bf16.mxu0 0
  %1723 = vmatmul.mubr.bf16.gmra.mrb[0].mxu0 %v1685
  %v1724 = vpop.f32.mrb[0].mxu0
  %v1725 = vadd.f32 0.0, %v1724
  %v1726 = vpop.f32.mrb[0].mxu0
  %v1727 = vpop.f32.mrb[0].mxu0
  %v1728 = vpop.f32.mrb[0].mxu0
  %1729 = vdwg.mxu0
  %v1731 = vsel %vm1498, %v1471, 0
  %v1734 = vsel %vm1502, %v1487, 0
  %1736 = vmatprep.subr.bf16.mxu0 0
  %1737 = vmatpush1.bf16.msra.mxu0 %v1734
  %1738 = vmatprep.subr.bf16.mxu0 0
  %1739 = vmatpush1.bf16.msra.mxu0 0
  %1740 = vmatprep.subr.bf16.mxu0 0
  %1741 = vmatpush1.bf16.msra.mxu0 0
  %1742 = vmatprep.subr.bf16.mxu0 0
  %1743 = vmatpush1.bf16.msra.mxu0 0
  %1744 = vmatprep.subr.bf16.mxu0 0
  %1745 = vmatpush1.bf16.msra.mxu0 0
  %1746 = vmatprep.subr.bf16.mxu0 0
  %1747 = vmatpush1.bf16.msra.mxu0 0
  %1748 = vmatprep.subr.bf16.mxu0 0
  %1749 = vmatpush1.bf16.msra.mxu0 0
  %1750 = vmatprep.subr.bf16.mxu0 0
  %1751 = vmatpush1.bf16.msra.mxu0 0
  %1752 = vmatprep.subr.bf16.mxu0 0
  %1753 = vmatpush1.bf16.msra.mxu0 0
  %1754 = vmatprep.subr.bf16.mxu0 0
  %1755 = vmatpush1.bf16.msra.mxu0 0
  %1756 = vmatprep.subr.bf16.mxu0 0
  %1757 = vmatpush1.bf16.msra.mxu0 0
  %1758 = vmatprep.subr.bf16.mxu0 0
  %1759 = vmatpush1.bf16.msra.mxu0 0
  %1760 = vmatprep.subr.bf16.mxu0 0
  %1761 = vmatpush1.bf16.msra.mxu0 0
  %1762 = vmatprep.subr.bf16.mxu0 0
  %1763 = vmatpush1.bf16.msra.mxu0 0
  %1764 = vmatprep.subr.bf16.mxu0 0
  %1765 = vmatpush1.bf16.msra.mxu0 0
  %1766 = vmatprep.subr.bf16.mxu0 0
  %1767 = vmatpush1.bf16.msra.mxu0 0
  %1768 = vmatprep.mubr.bf16.mxu0 0
  %1769 = vmatmul.mubr.bf16.gmra.mrb[0].mxu0 %v1731
  %v1770 = vpop.f32.mrb[0].mxu0
  %v1771 = vadd.f32 0.0, %v1770
  %v1772 = vpop.f32.mrb[0].mxu0
  %v1773 = vpop.f32.mrb[0].mxu0
  %v1774 = vpop.f32.mrb[0].mxu0
  %1775 = vdwg.mxu0
  %v1777 = vsel %vm1498, %v1472, 0
  %v1780 = vsel %vm1502, %v1488, 0
  %1782 = vmatprep.subr.bf16.mxu0 0
  %1783 = vmatpush1.bf16.msra.mxu0 %v1780
  %1784 = vmatprep.subr.bf16.mxu0 0
  %1785 = vmatpush1.bf16.msra.mxu0 0
  %1786 = vmatprep.subr.bf16.mxu0 0
  %1787 = vmatpush1.bf16.msra.mxu0 0
  %1788 = vmatprep.subr.bf16.mxu0 0
  %1789 = vmatpush1.bf16.msra.mxu0 0
  %1790 = vmatprep.subr.bf16.mxu0 0
  %1791 = vmatpush1.bf16.msra.mxu0 0
  %1792 = vmatprep.subr.bf16.mxu0 0
  %1793 = vmatpush1.bf16.msra.mxu0 0
  %1794 = vmatprep.subr.bf16.mxu0 0
  %1795 = vmatpush1.bf16.msra.mxu0 0
  %1796 = vmatprep.subr.bf16.mxu0 0
  %1797 = vmatpush1.bf16.msra.mxu0 0
  %1798 = vmatprep.subr.bf16.mxu0 0
  %1799 = vmatpush1.bf16.msra.mxu0 0
  %1800 = vmatprep.subr.bf16.mxu0 0
  %1801 = vmatpush1.bf16.msra.mxu0 0
  %1802 = vmatprep.subr.bf16.mxu0 0
  %1803 = vmatpush1.bf16.msra.mxu0 0
  %1804 = vmatprep.subr.bf16.mxu0 0
  %1805 = vmatpush1.bf16.msra.mxu0 0
  %1806 = vmatprep.subr.bf16.mxu0 0
  %1807 = vmatpush1.bf16.msra.mxu0 0
  %1808 = vmatprep.subr.bf16.mxu0 0
  %1809 = vmatpush1.bf16.msra.mxu0 0
  %1810 = vmatprep.subr.bf16.mxu0 0
  %1811 = vmatpush1.bf16.msra.mxu0 0
  %1812 = vmatprep.subr.bf16.mxu0 0
  %1813 = vmatpush1.bf16.msra.mxu0 0
  %1814 = vmatprep.mubr.bf16.mxu0 0
  %1815 = vmatmul.mubr.bf16.gmra.mrb[0].mxu0 %v1777
  %v1816 = vpop.f32.mrb[0].mxu0
  %v1817 = vadd.f32 0.0, %v1816
  %v1818 = vpop.f32.mrb[0].mxu0
  %v1819 = vpop.f32.mrb[0].mxu0
  %v1820 = vpop.f32.mrb[0].mxu0
  %1821 = vdwg.mxu0
  %v1823 = vsel %vm1498, %v1473, 0
  %v1826 = vsel %vm1502, %v1489, 0
  %1828 = vmatprep.subr.bf16.mxu0 0
  %1829 = vmatpush1.bf16.msra.mxu0 %v1826
  %1830 = vmatprep.subr.bf16.mxu0 0
  %1831 = vmatpush1.bf16.msra.mxu0 0
  %1832 = vmatprep.subr.bf16.mxu0 0
  %1833 = vmatpush1.bf16.msra.mxu0 0
  %1834 = vmatprep.subr.bf16.mxu0 0
  %1835 = vmatpush1.bf16.msra.mxu0 0
  %1836 = vmatprep.subr.bf16.mxu0 0
  %1837 = vmatpush1.bf16.msra.mxu0 0
  %1838 = vmatprep.subr.bf16.mxu0 0
  %1839 = vmatpush1.bf16.msra.mxu0 0
  %1840 = vmatprep.subr.bf16.mxu0 0
  %1841 = vmatpush1.bf16.msra.mxu0 0
  %1842 = vmatprep.subr.bf16.mxu0 0
  %1843 = vmatpush1.bf16.msra.mxu0 0
  %1844 = vmatprep.subr.bf16.mxu0 0
  %1845 = vmatpush1.bf16.msra.mxu0 0
  %1846 = vmatprep.subr.bf16.mxu0 0
  %1847 = vmatpush1.bf16.msra.mxu0 0
  %1848 = vmatprep.subr.bf16.mxu0 0
  %1849 = vmatpush1.bf16.msra.mxu0 0
  %1850 = vmatprep.subr.bf16.mxu0 0
  %1851 = vmatpush1.bf16.msra.mxu0 0
  %1852 = vmatprep.subr.bf16.mxu0 0
  %1853 = vmatpush1.bf16.msra.mxu0 0
  %1854 = vmatprep.subr.bf16.mxu0 0
  %1855 = vmatpush1.bf16.msra.mxu0 0
  %1856 = vmatprep.subr.bf16.mxu0 0
  %1857 = vmatpush1.bf16.msra.mxu0 0
  %1858 = vmatprep.subr.bf16.mxu0 0
  %1859 = vmatpush1.bf16.msra.mxu0 0
  %1860 = vmatprep.mubr.bf16.mxu0 0
  %1861 = vmatmul.mubr.bf16.gmra.mrb[0].mxu0 %v1823
  %v1862 = vpop.f32.mrb[0].mxu0
  %v1863 = vadd.f32 0.0, %v1862
  %v1864 = vpop.f32.mrb[0].mxu0
  %v1865 = vpop.f32.mrb[0].mxu0
  %v1866 = vpop.f32.mrb[0].mxu0
  %1867 = vdwg.mxu0
  %v1869 = vsel %vm1498, %v1474, 0
  %v1872 = vsel %vm1502, %v1490, 0
  %1874 = vmatprep.subr.bf16.mxu0 0
  %1875 = vmatpush1.bf16.msra.mxu0 %v1872
  %1876 = vmatprep.subr.bf16.mxu0 0
  %1877 = vmatpush1.bf16.msra.mxu0 0
  %1878 = vmatprep.subr.bf16.mxu0 0
  %1879 = vmatpush1.bf16.msra.mxu0 0
  %1880 = vmatprep.subr.bf16.mxu0 0
  %1881 = vmatpush1.bf16.msra.mxu0 0
  %1882 = vmatprep.subr.bf16.mxu0 0
  %1883 = vmatpush1.bf16.msra.mxu0 0
  %1884 = vmatprep.subr.bf16.mxu0 0
  %1885 = vmatpush1.bf16.msra.mxu0 0
  %1886 = vmatprep.subr.bf16.mxu0 0
  %1887 = vmatpush1.bf16.msra.mxu0 0
  %1888 = vmatprep.subr.bf16.mxu0 0
  %1889 = vmatpush1.bf16.msra.mxu0 0
  %1890 = vmatprep.subr.bf16.mxu0 0
  %1891 = vmatpush1.bf16.msra.mxu0 0
  %1892 = vmatprep.subr.bf16.mxu0 0
  %1893 = vmatpush1.bf16.msra.mxu0 0
  %1894 = vmatprep.subr.bf16.mxu0 0
  %1895 = vmatpush1.bf16.msra.mxu0 0
  %1896 = vmatprep.subr.bf16.mxu0 0
  %1897 = vmatpush1.bf16.msra.mxu0 0
  %1898 = vmatprep.subr.bf16.mxu0 0
  %1899 = vmatpush1.bf16.msra.mxu0 0
  %1900 = vmatprep.subr.bf16.mxu0 0
  %1901 = vmatpush1.bf16.msra.mxu0 0
  %1902 = vmatprep.subr.bf16.mxu0 0
  %1903 = vmatpush1.bf16.msra.mxu0 0
  %1904 = vmatprep.subr.bf16.mxu0 0
  %1905 = vmatpush1.bf16.msra.mxu0 0
  %1906 = vmatprep.mubr.bf16.mxu0 0
  %1907 = vmatmul.mubr.bf16.gmra.mrb[0].mxu0 %v1869
  %v1908 = vpop.f32.mrb[0].mxu0
  %v1909 = vadd.f32 0.0, %v1908
  %v1910 = vpop.f32.mrb[0].mxu0
  %v1911 = vpop.f32.mrb[0].mxu0
  %v1912 = vpop.f32.mrb[0].mxu0
  %1913 = vdwg.mxu0
  %v1915 = vsel %vm1498, %v1475, 0
  %v1918 = vsel %vm1502, %v1491, 0
  %1920 = vmatprep.subr.bf16.mxu0 0
  %1921 = vmatpush1.bf16.msra.mxu0 %v1918
  %1922 = vmatprep.subr.bf16.mxu0 0
  %1923 = vmatpush1.bf16.msra.mxu0 0
  %1924 = vmatprep.subr.bf16.mxu0 0
  %1925 = vmatpush1.bf16.msra.mxu0 0
  %1926 = vmatprep.subr.bf16.mxu0 0
  %1927 = vmatpush1.bf16.msra.mxu0 0
  %1928 = vmatprep.subr.bf16.mxu0 0
  %1929 = vmatpush1.bf16.msra.mxu0 0
  %1930 = vmatprep.subr.bf16.mxu0 0
  %1931 = vmatpush1.bf16.msra.mxu0 0
  %1932 = vmatprep.subr.bf16.mxu0 0
  %1933 = vmatpush1.bf16.msra.mxu0 0
  %1934 = vmatprep.subr.bf16.mxu0 0
  %1935 = vmatpush1.bf16.msra.mxu0 0
  %1936 = vmatprep.subr.bf16.mxu0 0
  %1937 = vmatpush1.bf16.msra.mxu0 0
  %1938 = vmatprep.subr.bf16.mxu0 0
  %1939 = vmatpush1.bf16.msra.mxu0 0
  %1940 = vmatprep.subr.bf16.mxu0 0
  %1941 = vmatpush1.bf16.msra.mxu0 0
  %1942 = vmatprep.subr.bf16.mxu0 0
  %1943 = vmatpush1.bf16.msra.mxu0 0
  %1944 = vmatprep.subr.bf16.mxu0 0
  %1945 = vmatpush1.bf16.msra.mxu0 0
  %1946 = vmatprep.subr.bf16.mxu0 0
  %1947 = vmatpush1.bf16.msra.mxu0 0
  %1948 = vmatprep.subr.bf16.mxu0 0
  %1949 = vmatpush1.bf16.msra.mxu0 0
  %1950 = vmatprep.subr.bf16.mxu0 0
  %1951 = vmatpush1.bf16.msra.mxu0 0
  %1952 = vmatprep.mubr.bf16.mxu0 0
  %1953 = vmatmul.mubr.bf16.gmra.mrb[0].mxu0 %v1915
  %v1954 = vpop.f32.mrb[0].mxu0
  %v1955 = vadd.f32 0.0, %v1954
  %v1956 = vpop.f32.mrb[0].mxu0
  %v1957 = vpop.f32.mrb[0].mxu0
  %v1958 = vpop.f32.mrb[0].mxu0
  %1959 = vdwg.mxu0
  %v1961 = vsel %vm1498, %v1476, 0
  %v1964 = vsel %vm1502, %v1492, 0
  %1966 = vmatprep.subr.bf16.mxu0 0
  %1967 = vmatpush1.bf16.msra.mxu0 %v1964
  %1968 = vmatprep.subr.bf16.mxu0 0
  %1969 = vmatpush1.bf16.msra.mxu0 0
  %1970 = vmatprep.subr.bf16.mxu0 0
  %1971 = vmatpush1.bf16.msra.mxu0 0
  %1972 = vmatprep.subr.bf16.mxu0 0
  %1973 = vmatpush1.bf16.msra.mxu0 0
  %1974 = vmatprep.subr.bf16.mxu0 0
  %1975 = vmatpush1.bf16.msra.mxu0 0
  %1976 = vmatprep.subr.bf16.mxu0 0
  %1977 = vmatpush1.bf16.msra.mxu0 0
  %1978 = vmatprep.subr.bf16.mxu0 0
  %1979 = vmatpush1.bf16.msra.mxu0 0
  %1980 = vmatprep.subr.bf16.mxu0 0
  %1981 = vmatpush1.bf16.msra.mxu0 0
  %1982 = vmatprep.subr.bf16.mxu0 0
  %1983 = vmatpush1.bf16.msra.mxu0 0
  %1984 = vmatprep.subr.bf16.mxu0 0
  %1985 = vmatpush1.bf16.msra.mxu0 0
  %1986 = vmatprep.subr.bf16.mxu0 0
  %1987 = vmatpush1.bf16.msra.mxu0 0
  %1988 = vmatprep.subr.bf16.mxu0 0
  %1989 = vmatpush1.bf16.msra.mxu0 0
  %1990 = vmatprep.subr.bf16.mxu0 0
  %1991 = vmatpush1.bf16.msra.mxu0 0
  %1992 = vmatprep.subr.bf16.mxu0 0
  %1993 = vmatpush1.bf16.msra.mxu0 0
  %1994 = vmatprep.subr.bf16.mxu0 0
  %1995 = vmatpush1.bf16.msra.mxu0 0
  %1996 = vmatprep.subr.bf16.mxu0 0
  %1997 = vmatpush1.bf16.msra.mxu0 0
  %1998 = vmatprep.mubr.bf16.mxu0 0
  %1999 = vmatmul.mubr.bf16.gmra.mrb[0].mxu0 %v1961
  %v2000 = vpop.f32.mrb[0].mxu0
  %v2001 = vadd.f32 0.0, %v2000
  %v2002 = vpop.f32.mrb[0].mxu0
  %v2003 = vpop.f32.mrb[0].mxu0
  %v2004 = vpop.f32.mrb[0].mxu0
  %2005 = vdwg.mxu0
  %v2007 = vsel %vm1498, %v1477, 0
  %v2010 = vsel %vm1502, %v1493, 0
  %2012 = vmatprep.subr.bf16.mxu0 0
  %2013 = vmatpush1.bf16.msra.mxu0 %v2010
  %2014 = vmatprep.subr.bf16.mxu0 0
  %2015 = vmatpush1.bf16.msra.mxu0 0
  %2016 = vmatprep.subr.bf16.mxu0 0
  %2017 = vmatpush1.bf16.msra.mxu0 0
  %2018 = vmatprep.subr.bf16.mxu0 0
  %2019 = vmatpush1.bf16.msra.mxu0 0
  %2020 = vmatprep.subr.bf16.mxu0 0
  %2021 = vmatpush1.bf16.msra.mxu0 0
  %2022 = vmatprep.subr.bf16.mxu0 0
  %2023 = vmatpush1.bf16.msra.mxu0 0
  %2024 = vmatprep.subr.bf16.mxu0 0
  %2025 = vmatpush1.bf16.msra.mxu0 0
  %2026 = vmatprep.subr.bf16.mxu0 0
  %2027 = vmatpush1.bf16.msra.mxu0 0
  %2028 = vmatprep.subr.bf16.mxu0 0
  %2029 = vmatpush1.bf16.msra.mxu0 0
  %2030 = vmatprep.subr.bf16.mxu0 0
  %2031 = vmatpush1.bf16.msra.mxu0 0
  %2032 = vmatprep.subr.bf16.mxu0 0
  %2033 = vmatpush1.bf16.msra.mxu0 0
  %2034 = vmatprep.subr.bf16.mxu0 0
  %2035 = vmatpush1.bf16.msra.mxu0 0
  %2036 = vmatprep.subr.bf16.mxu0 0
  %2037 = vmatpush1.bf16.msra.mxu0 0
  %2038 = vmatprep.subr.bf16.mxu0 0
  %2039 = vmatpush1.bf16.msra.mxu0 0
  %2040 = vmatprep.subr.bf16.mxu0 0
  %2041 = vmatpush1.bf16.msra.mxu0 0
  %2042 = vmatprep.subr.bf16.mxu0 0
  %2043 = vmatpush1.bf16.msra.mxu0 0
  %2044 = vmatprep.mubr.bf16.mxu0 0
  %2045 = vmatmul.mubr.bf16.gmra.mrb[0].mxu0 %v2007
  %v2046 = vpop.f32.mrb[0].mxu0
  %v2047 = vadd.f32 0.0, %v2046
  %v2048 = vpop.f32.mrb[0].mxu0
  %v2049 = vpop.f32.mrb[0].mxu0
  %v2050 = vpop.f32.mrb[0].mxu0
  %2051 = vdwg.mxu0
  %v2053 = vsel %vm1498, %v1478, 0
  %v2056 = vsel %vm1502, %v1494, 0
  %2058 = vmatprep.subr.bf16.mxu0 0
  %2059 = vmatpush1.bf16.msra.mxu0 %v2056
  %2060 = vmatprep.subr.bf16.mxu0 0
  %2061 = vmatpush1.bf16.msra.mxu0 0
  %2062 = vmatprep.subr.bf16.mxu0 0
  %2063 = vmatpush1.bf16.msra.mxu0 0
  %2064 = vmatprep.subr.bf16.mxu0 0
  %2065 = vmatpush1.bf16.msra.mxu0 0
  %2066 = vmatprep.subr.bf16.mxu0 0
  %2067 = vmatpush1.bf16.msra.mxu0 0
  %2068 = vmatprep.subr.bf16.mxu0 0
  %2069 = vmatpush1.bf16.msra.mxu0 0
  %2070 = vmatprep.subr.bf16.mxu0 0
  %2071 = vmatpush1.bf16.msra.mxu0 0
  %2072 = vmatprep.subr.bf16.mxu0 0
  %2073 = vmatpush1.bf16.msra.mxu0 0
  %2074 = vmatprep.subr.bf16.mxu0 0
  %2075 = vmatpush1.bf16.msra.mxu0 0
  %2076 = vmatprep.subr.bf16.mxu0 0
  %2077 = vmatpush1.bf16.msra.mxu0 0
  %2078 = vmatprep.subr.bf16.mxu0 0
  %2079 = vmatpush1.bf16.msra.mxu0 0
  %2080 = vmatprep.subr.bf16.mxu0 0
  %2081 = vmatpush1.bf16.msra.mxu0 0
  %2082 = vmatprep.subr.bf16.mxu0 0
  %2083 = vmatpush1.bf16.msra.mxu0 0
  %2084 = vmatprep.subr.bf16.mxu0 0
  %2085 = vmatpush1.bf16.msra.mxu0 0
  %2086 = vmatprep.subr.bf16.mxu0 0
  %2087 = vmatpush1.bf16.msra.mxu0 0
  %2088 = vmatprep.subr.bf16.mxu0 0
  %2089 = vmatpush1.bf16.msra.mxu0 0
  %2090 = vmatprep.mubr.bf16.mxu0 0
  %2091 = vmatmul.mubr.bf16.gmra.mrb[0].mxu0 %v2053
  %v2092 = vpop.f32.mrb[0].mxu0
  %v2093 = vadd.f32 0.0, %v2092
  %v2094 = vpop.f32.mrb[0].mxu0
  %v2095 = vpop.f32.mrb[0].mxu0
  %v2096 = vpop.f32.mrb[0].mxu0
  %2097 = vdwg.mxu0
  %v2099 = vsel %vm1498, %v1479, 0
  %v2102 = vsel %vm1502, %v1495, 0
  %2104 = vmatprep.subr.bf16.mxu0 0
  %2105 = vmatpush1.bf16.msra.mxu0 %v2102
  %2106 = vmatprep.subr.bf16.mxu0 0
  %2107 = vmatpush1.bf16.msra.mxu0 0
  %2108 = vmatprep.subr.bf16.mxu0 0
  %2109 = vmatpush1.bf16.msra.mxu0 0
  %2110 = vmatprep.subr.bf16.mxu0 0
  %2111 = vmatpush1.bf16.msra.mxu0 0
  %2112 = vmatprep.subr.bf16.mxu0 0
  %2113 = vmatpush1.bf16.msra.mxu0 0
  %2114 = vmatprep.subr.bf16.mxu0 0
  %2115 = vmatpush1.bf16.msra.mxu0 0
  %2116 = vmatprep.subr.bf16.mxu0 0
  %2117 = vmatpush1.bf16.msra.mxu0 0
  %2118 = vmatprep.subr.bf16.mxu0 0
  %2119 = vmatpush1.bf16.msra.mxu0 0
  %2120 = vmatprep.subr.bf16.mxu0 0
  %2121 = vmatpush1.bf16.msra.mxu0 0
  %2122 = vmatprep.subr.bf16.mxu0 0
  %2123 = vmatpush1.bf16.msra.mxu0 0
  %2124 = vmatprep.subr.bf16.mxu0 0
  %2125 = vmatpush1.bf16.msra.mxu0 0
  %2126 = vmatprep.subr.bf16.mxu0 0
  %2127 = vmatpush1.bf16.msra.mxu0 0
  %2128 = vmatprep.subr.bf16.mxu0 0
  %2129 = vmatpush1.bf16.msra.mxu0 0
  %2130 = vmatprep.subr.bf16.mxu0 0
  %2131 = vmatpush1.bf16.msra.mxu0 0
  %2132 = vmatprep.subr.bf16.mxu0 0
  %2133 = vmatpush1.bf16.msra.mxu0 0
  %2134 = vmatprep.subr.bf16.mxu0 0
  %2135 = vmatpush1.bf16.msra.mxu0 0
  %2136 = vmatprep.mubr.bf16.mxu0 0
  %2137 = vmatmul.mubr.bf16.gmra.mrb[0].mxu0 %v2099
  %v2138 = vpop.f32.mrb[0].mxu0
  %v2139 = vadd.f32 0.0, %v2138
  %v2140 = vpop.f32.mrb[0].mxu0
  %v2141 = vpop.f32.mrb[0].mxu0
  %v2142 = vpop.f32.mrb[0].mxu0
  %2143 = vdwg.mxu0
  %v2145 = vsel %vm1498, %v1480, 0
  %v2148 = vsel %vm1502, %v1496, 0
  %2150 = vmatprep.subr.bf16.mxu0 0
  %2151 = vmatpush1.bf16.msra.mxu0 %v2148
  %2152 = vmatprep.subr.bf16.mxu0 0
  %2153 = vmatpush1.bf16.msra.mxu0 0
  %2154 = vmatprep.subr.bf16.mxu0 0
  %2155 = vmatpush1.bf16.msra.mxu0 0
  %2156 = vmatprep.subr.bf16.mxu0 0
  %2157 = vmatpush1.bf16.msra.mxu0 0
  %2158 = vmatprep.subr.bf16.mxu0 0
  %2159 = vmatpush1.bf16.msra.mxu0 0
  %2160 = vmatprep.subr.bf16.mxu0 0
  %2161 = vmatpush1.bf16.msra.mxu0 0
  %2162 = vmatprep.subr.bf16.mxu0 0
  %2163 = vmatpush1.bf16.msra.mxu0 0
  %2164 = vmatprep.subr.bf16.mxu0 0
  %2165 = vmatpush1.bf16.msra.mxu0 0
  %2166 = vmatprep.subr.bf16.mxu0 0
  %2167 = vmatpush1.bf16.msra.mxu0 0
  %2168 = vmatprep.subr.bf16.mxu0 0
  %2169 = vmatpush1.bf16.msra.mxu0 0
  %2170 = vmatprep.subr.bf16.mxu0 0
  %2171 = vmatpush1.bf16.msra.mxu0 0
  %2172 = vmatprep.subr.bf16.mxu0 0
  %2173 = vmatpush1.bf16.msra.mxu0 0
  %2174 = vmatprep.subr.bf16.mxu0 0
  %2175 = vmatpush1.bf16.msra.mxu0 0
  %2176 = vmatprep.subr.bf16.mxu0 0
  %2177 = vmatpush1.bf16.msra.mxu0 0
  %2178 = vmatprep.subr.bf16.mxu0 0
  %2179 = vmatpush1.bf16.msra.mxu0 0
  %2180 = vmatprep.subr.bf16.mxu0 0
  %2181 = vmatpush1.bf16.msra.mxu0 0
  %2182 = vmatprep.mubr.bf16.mxu0 0
  %2183 = vmatmul.mubr.bf16.gmra.mrb[0].mxu0 %v2145
  %v2184 = vpop.f32.mrb[0].mxu0
  %v2185 = vadd.f32 0.0, %v2184
  %v2186 = vpop.f32.mrb[0].mxu0
  %v2187 = vpop.f32.mrb[0].mxu0
  %v2188 = vpop.f32.mrb[0].mxu0
  %2189 = vdwg.mxu0
  %v2191 = vsel %vm1498, %v1481, 0
  %v2194 = vsel %vm1502, %v1497, 0
  %2196 = vmatprep.subr.bf16.mxu0 0
  %2197 = vmatpush1.bf16.msra.mxu0 %v2194
  %2198 = vmatprep.subr.bf16.mxu0 0
  %2199 = vmatpush1.bf16.msra.mxu0 0
  %2200 = vmatprep.subr.bf16.mxu0 0
  %2201 = vmatpush1.bf16.msra.mxu0 0
  %2202 = vmatprep.subr.bf16.mxu0 0
  %2203 = vmatpush1.bf16.msra.mxu0 0
  %2204 = vmatprep.subr.bf16.mxu0 0
  %2205 = vmatpush1.bf16.msra.mxu0 0
  %2206 = vmatprep.subr.bf16.mxu0 0
  %2207 = vmatpush1.bf16.msra.mxu0 0
  %2208 = vmatprep.subr.bf16.mxu0 0
  %2209 = vmatpush1.bf16.msra.mxu0 0
  %2210 = vmatprep.subr.bf16.mxu0 0
  %2211 = vmatpush1.bf16.msra.mxu0 0
  %2212 = vmatprep.subr.bf16.mxu0 0
  %2213 = vmatpush1.bf16.msra.mxu0 0
  %2214 = vmatprep.subr.bf16.mxu0 0
  %2215 = vmatpush1.bf16.msra.mxu0 0
  %2216 = vmatprep.subr.bf16.mxu0 0
  %2217 = vmatpush1.bf16.msra.mxu0 0
  %2218 = vmatprep.subr.bf16.mxu0 0
  %2219 = vmatpush1.bf16.msra.mxu0 0
  %2220 = vmatprep.subr.bf16.mxu0 0
  %2221 = vmatpush1.bf16.msra.mxu0 0
  %2222 = vmatprep.subr.bf16.mxu0 0
  %2223 = vmatpush1.bf16.msra.mxu0 0
  %2224 = vmatprep.subr.bf16.mxu0 0
  %2225 = vmatpush1.bf16.msra.mxu0 0
  %2226 = vmatprep.subr.bf16.mxu0 0
  %2227 = vmatpush1.bf16.msra.mxu0 0
  %2228 = vmatprep.mubr.bf16.mxu0 0
  %2229 = vmatmul.mubr.bf16.gmra.mrb[0].mxu0 %v2191
  %v2230 = vpop.f32.mrb[0].mxu0
  %v2231 = vadd.f32 0.0, %v2230
  %v2232 = vpop.f32.mrb[0].mxu0
  %v2233 = vpop.f32.mrb[0].mxu0
  %v2234 = vpop.f32.mrb[0].mxu0
  %2235 = vdwg.mxu0
  %vm2236 = vcmask 1041408
  %v2237 = vsel %vm2236, %v1541, 0.0
  %v2238 = vsel %vm2236, %v1587, 0.0
  %v2239 = vadd.f32 %v2237, %v2238
  %v2240 = vsel %vm2236, %v1633, 0.0
  %v2241 = vadd.f32 %v2239, %v2240
  %v2242 = vsel %vm2236, %v1679, 0.0
  %v2243 = vadd.f32 %v2241, %v2242
  %v2244 = vsel %vm2236, %v1725, 0.0
  %v2245 = vadd.f32 %v2243, %v2244
  %v2246 = vsel %vm2236, %v1771, 0.0
  %v2247 = vadd.f32 %v2245, %v2246
  %v2248 = vsel %vm2236, %v1817, 0.0
  %v2249 = vadd.f32 %v2247, %v2248
  %v2250 = vsel %vm2236, %v1863, 0.0
  %v2251 = vadd.f32 %v2249, %v2250
  %v2252 = vsel %vm2236, %v1909, 0.0
  %v2253 = vadd.f32 %v2251, %v2252
  %v2254 = vsel %vm2236, %v1955, 0.0
  %v2255 = vadd.f32 %v2253, %v2254
  %v2256 = vsel %vm2236, %v2001, 0.0
  %v2257 = vadd.f32 %v2255, %v2256
  %v2258 = vsel %vm2236, %v2047, 0.0
  %v2259 = vadd.f32 %v2257, %v2258
  %v2260 = vsel %vm2236, %v2093, 0.0
  %v2261 = vadd.f32 %v2259, %v2260
  %v2262 = vsel %vm2236, %v2139, 0.0
  %v2263 = vadd.f32 %v2261, %v2262
  %v2264 = vsel %vm2236, %v2185, 0.0
  %v2265 = vadd.f32 %v2263, %v2264
  %v2266 = vsel %vm2236, %v2231, 0.0
  %v2267 = vadd.f32 %v2265, %v2266
  %v2268 = vmul.f32 %v2267, 0.5
  %v2269 = vpack.c.bf16 %v2268, %v2268
  %v2270 = vld [vmem:[%s6] sm:$0xf]
  %v2271 = vld [vmem:[%s6 + $0x4] sm:$0xf]
  %v2272 = vld [vmem:[%s6 + $0x8] sm:$0xf]
  %v2273 = vld [vmem:[%s6 + $0xc] sm:$0xf]
  %v2274 = vld [vmem:[%s6 + $0x10] sm:$0xf]
  %v2275 = vld [vmem:[%s6 + $0x14] sm:$0xf]
  %v2276 = vld [vmem:[%s6 + $0x18] sm:$0xf]
  %v2277 = vld [vmem:[%s6 + $0x1c] sm:$0xf]
  %v2278 = vld [vmem:[%s6 + $0x20] sm:$0xf]
  %v2279 = vld [vmem:[%s6 + $0x24] sm:$0xf]
  %v2280 = vld [vmem:[%s6 + $0x28] sm:$0xf]
  %v2281 = vld [vmem:[%s6 + $0x2c] sm:$0xf]
  %v2282 = vld [vmem:[%s6 + $0x30] sm:$0xf]
  %v2283 = vld [vmem:[%s6 + $0x34] sm:$0xf]
  %v2284 = vld [vmem:[%s6 + $0x38] sm:$0xf]
  %v2285 = vld [vmem:[%s6 + $0x3c] sm:$0xf]
  %v2286 = vld [vmem:[%s7] sm:$0x1]
  %v2288 = vlaneseq
  %v2289 = vshrl.u32 %v2288, 7
  %v2290 = vsub.s32 0, %v2289
  %v2291 = vrot.slane %v2286, %v2290
  %v2309 = vunpack.c.l.b16 %v2270
  %v2310 = vunpack.c.l.b16 %v2271
  %v2311 = vunpack.c.l.b16 %v2272
  %v2312 = vunpack.c.l.b16 %v2273
  %v2313 = vunpack.c.l.b16 %v2274
  %v2314 = vunpack.c.l.b16 %v2275
  %v2315 = vunpack.c.l.b16 %v2276
  %v2316 = vunpack.c.l.b16 %v2277
  %v2317 = vunpack.c.l.b16 %v2278
  %v2318 = vunpack.c.l.b16 %v2279
  %v2319 = vunpack.c.l.b16 %v2280
  %v2320 = vunpack.c.l.b16 %v2281
  %v2321 = vunpack.c.l.b16 %v2282
  %v2322 = vunpack.c.l.b16 %v2283
  %v2323 = vunpack.c.l.b16 %v2284
  %v2324 = vunpack.c.l.b16 %v2285
  %v2325 = vpack.c.b16 %v2310, %v2309
  %v2326 = vpack.c.b16 %v2312, %v2311
  %v2327 = vpack.c.b16 %v2314, %v2313
  %v2328 = vpack.c.b16 %v2316, %v2315
  %v2329 = vpack.c.b16 %v2318, %v2317
  %v2330 = vpack.c.b16 %v2320, %v2319
  %v2331 = vpack.c.b16 %v2322, %v2321
  %v2332 = vpack.c.b16 %v2324, %v2323
  %2341 = vmatprep.subr.bf16.mxu0 0
  %2342 = vmatpush1.bf16.msra.mxu0 %v2325
  %2343 = vmatprep.subr.bf16.mxu0 0
  %2344 = vmatpush1.bf16.msra.mxu0 %v2326
  %2345 = vmatprep.subr.bf16.mxu0 0
  %2346 = vmatpush1.bf16.msra.mxu0 %v2327
  %2347 = vmatprep.subr.bf16.mxu0 0
  %2348 = vmatpush1.bf16.msra.mxu0 %v2328
  %2349 = vmatprep.subr.bf16.mxu0 0
  %2350 = vmatpush1.bf16.msra.mxu0 %v2329
  %2351 = vmatprep.subr.bf16.mxu0 0
  %2352 = vmatpush1.bf16.msra.mxu0 %v2330
  %2353 = vmatprep.subr.bf16.mxu0 0
  %2354 = vmatpush1.bf16.msra.mxu0 %v2331
  %2355 = vmatprep.subr.bf16.mxu0 0
  %2356 = vmatpush1.bf16.msra.mxu0 %v2332
  %2357 = vmatprep.subr.bf16.mxu0 0
  %2358 = vmatpush1.bf16.msra.mxu0 0
  %2359 = vmatprep.subr.bf16.mxu0 0
  %2360 = vmatpush1.bf16.msra.mxu0 0
  %2361 = vmatprep.subr.bf16.mxu0 0
  %2362 = vmatpush1.bf16.msra.mxu0 0
  %2363 = vmatprep.subr.bf16.mxu0 0
  %2364 = vmatpush1.bf16.msra.mxu0 0
  %2365 = vmatprep.subr.bf16.mxu0 0
  %2366 = vmatpush1.bf16.msra.mxu0 0
  %2367 = vmatprep.subr.bf16.mxu0 0
  %2368 = vmatpush1.bf16.msra.mxu0 0
  %2369 = vmatprep.subr.bf16.mxu0 0
  %2370 = vmatpush1.bf16.msra.mxu0 0
  %2371 = vmatprep.subr.bf16.mxu0 0
  %2372 = vmatpush1.bf16.msra.mxu0 0
  %2373 = vmatprep.mubr.bf16.mxu0 0
  %2374 = vmatmul.mubr.bf16.gmra.mrb[0].mxu0 %v2269
  %v2375 = vpop.f32.mrb[0].mxu0
  %v2376 = vadd.f32 %v2291, %v2375
  %v2377 = vpop.f32.mrb[0].mxu0
  %v2378 = vpop.f32.mrb[0].mxu0
  %v2379 = vpop.f32.mrb[0].mxu0
  %2380 = vdwg.mxu0
  %v2381 = vpack.c.bf16 %v2376, %v2376
  %v2382 = vld [vmem:[%s8] sm:$0xf]
  %v2383 = vld [vmem:[%s8 + $0x4] sm:$0xf]
  %v2384 = vld [vmem:[%s8 + $0x8] sm:$0xf]
  %v2385 = vld [vmem:[%s8 + $0xc] sm:$0xf]
  %v2386 = vld [vmem:[%s8 + $0x10] sm:$0xf]
  %v2387 = vld [vmem:[%s8 + $0x14] sm:$0xf]
  %v2388 = vld [vmem:[%s8 + $0x18] sm:$0xf]
  %v2389 = vld [vmem:[%s8 + $0x1c] sm:$0xf]
  %v2390 = vld [vmem:[%s8 + $0x20] sm:$0xf]
  %v2391 = vld [vmem:[%s8 + $0x24] sm:$0xf]
  %v2392 = vld [vmem:[%s8 + $0x28] sm:$0xf]
  %v2393 = vld [vmem:[%s8 + $0x2c] sm:$0xf]
  %v2394 = vld [vmem:[%s8 + $0x30] sm:$0xf]
  %v2395 = vld [vmem:[%s8 + $0x34] sm:$0xf]
  %v2396 = vld [vmem:[%s8 + $0x38] sm:$0xf]
  %v2397 = vld [vmem:[%s8 + $0x3c] sm:$0xf]
  %v2398 = vld [vmem:[%s9] sm:$0x1]
  %v2400 = vlaneseq
  %v2401 = vshrl.u32 %v2400, 7
  %v2402 = vsub.s32 0, %v2401
  %v2403 = vrot.slane %v2398, %v2402
  %v2421 = vunpack.c.l.b16 %v2382
  %v2422 = vunpack.c.l.b16 %v2383
  %v2423 = vunpack.c.l.b16 %v2384
  %v2424 = vunpack.c.l.b16 %v2385
  %v2425 = vunpack.c.l.b16 %v2386
  %v2426 = vunpack.c.l.b16 %v2387
  %v2427 = vunpack.c.l.b16 %v2388
  %v2428 = vunpack.c.l.b16 %v2389
  %v2429 = vunpack.c.l.b16 %v2390
  %v2430 = vunpack.c.l.b16 %v2391
  %v2431 = vunpack.c.l.b16 %v2392
  %v2432 = vunpack.c.l.b16 %v2393
  %v2433 = vunpack.c.l.b16 %v2394
  %v2434 = vunpack.c.l.b16 %v2395
  %v2435 = vunpack.c.l.b16 %v2396
  %v2436 = vunpack.c.l.b16 %v2397
  %v2437 = vpack.c.b16 %v2422, %v2421
  %v2438 = vpack.c.b16 %v2424, %v2423
  %v2439 = vpack.c.b16 %v2426, %v2425
  %v2440 = vpack.c.b16 %v2428, %v2427
  %v2441 = vpack.c.b16 %v2430, %v2429
  %v2442 = vpack.c.b16 %v2432, %v2431
  %v2443 = vpack.c.b16 %v2434, %v2433
  %v2444 = vpack.c.b16 %v2436, %v2435
  %2453 = vmatprep.subr.bf16.mxu0 0
  %2454 = vmatpush1.bf16.msra.mxu0 %v2437
  %2455 = vmatprep.subr.bf16.mxu0 0
  %2456 = vmatpush1.bf16.msra.mxu0 %v2438
  %2457 = vmatprep.subr.bf16.mxu0 0
  %2458 = vmatpush1.bf16.msra.mxu0 %v2439
  %2459 = vmatprep.subr.bf16.mxu0 0
  %2460 = vmatpush1.bf16.msra.mxu0 %v2440
  %2461 = vmatprep.subr.bf16.mxu0 0
  %2462 = vmatpush1.bf16.msra.mxu0 %v2441
  %2463 = vmatprep.subr.bf16.mxu0 0
  %2464 = vmatpush1.bf16.msra.mxu0 %v2442
  %2465 = vmatprep.subr.bf16.mxu0 0
  %2466 = vmatpush1.bf16.msra.mxu0 %v2443
  %2467 = vmatprep.subr.bf16.mxu0 0
  %2468 = vmatpush1.bf16.msra.mxu0 %v2444
  %2469 = vmatprep.subr.bf16.mxu0 0
  %2470 = vmatpush1.bf16.msra.mxu0 0
  %2471 = vmatprep.subr.bf16.mxu0 0
  %2472 = vmatpush1.bf16.msra.mxu0 0
  %2473 = vmatprep.subr.bf16.mxu0 0
  %2474 = vmatpush1.bf16.msra.mxu0 0
  %2475 = vmatprep.subr.bf16.mxu0 0
  %2476 = vmatpush1.bf16.msra.mxu0 0
  %2477 = vmatprep.subr.bf16.mxu0 0
  %2478 = vmatpush1.bf16.msra.mxu0 0
  %2479 = vmatprep.subr.bf16.mxu0 0
  %2480 = vmatpush1.bf16.msra.mxu0 0
  %2481 = vmatprep.subr.bf16.mxu0 0
  %2482 = vmatpush1.bf16.msra.mxu0 0
  %2483 = vmatprep.subr.bf16.mxu0 0
  %2484 = vmatpush1.bf16.msra.mxu0 0
  %2485 = vmatprep.mubr.bf16.mxu0 0
  %2486 = vmatmul.mubr.bf16.gmra.mrb[0].mxu0 %v2381
  %v2487 = vpop.f32.mrb[0].mxu0
  %v2488 = vadd.f32 %v2403, %v2487
  %v2489 = vpop.f32.mrb[0].mxu0
  %v2490 = vpop.f32.mrb[0].mxu0
  %v2491 = vpop.f32.mrb[0].mxu0
  %2492 = vdwg.mxu0
  %v2493 = vmax.f32 %v2488, 0.0
  %v2494 = vpack.c.bf16 %v2493, %v2493
  %v2495 = vld [vmem:[%s10] sm:$0xf]
  %v2496 = vld [vmem:[%s10 + $0x4] sm:$0xf]
  %v2497 = vld [vmem:[%s10 + $0x8] sm:$0xf]
  %v2498 = vld [vmem:[%s10 + $0xc] sm:$0xf]
  %v2499 = vld [vmem:[%s10 + $0x10] sm:$0xf]
  %v2500 = vld [vmem:[%s10 + $0x14] sm:$0xf]
  %v2501 = vld [vmem:[%s10 + $0x18] sm:$0xf]
  %v2502 = vld [vmem:[%s10 + $0x1c] sm:$0xf]
  %v2503 = vld [vmem:[%s10 + $0x20] sm:$0xf]
  %v2504 = vld [vmem:[%s10 + $0x24] sm:$0xf]
  %v2505 = vld [vmem:[%s10 + $0x28] sm:$0xf]
  %v2506 = vld [vmem:[%s10 + $0x2c] sm:$0xf]
  %v2507 = vld [vmem:[%s10 + $0x30] sm:$0xf]
  %v2508 = vld [vmem:[%s10 + $0x34] sm:$0xf]
  %v2509 = vld [vmem:[%s10 + $0x38] sm:$0xf]
  %v2510 = vld [vmem:[%s10 + $0x3c] sm:$0xf]
  %v2511 = vld [vmem:[%s11] sm:$0x1]
  %v2513 = vlaneseq
  %v2514 = vshrl.u32 %v2513, 7
  %v2515 = vsub.s32 0, %v2514
  %v2516 = vrot.slane %v2511, %v2515
  %v2534 = vunpack.c.l.b16 %v2495
  %v2535 = vunpack.c.l.b16 %v2496
  %v2536 = vunpack.c.l.b16 %v2497
  %v2537 = vunpack.c.l.b16 %v2498
  %v2538 = vunpack.c.l.b16 %v2499
  %v2539 = vunpack.c.l.b16 %v2500
  %v2540 = vunpack.c.l.b16 %v2501
  %v2541 = vunpack.c.l.b16 %v2502
  %v2542 = vunpack.c.l.b16 %v2503
  %v2543 = vunpack.c.l.b16 %v2504
  %v2544 = vunpack.c.l.b16 %v2505
  %v2545 = vunpack.c.l.b16 %v2506
  %v2546 = vunpack.c.l.b16 %v2507
  %v2547 = vunpack.c.l.b16 %v2508
  %v2548 = vunpack.c.l.b16 %v2509
  %v2549 = vunpack.c.l.b16 %v2510
  %v2550 = vpack.c.b16 %v2535, %v2534
  %v2551 = vpack.c.b16 %v2537, %v2536
  %v2552 = vpack.c.b16 %v2539, %v2538
  %v2553 = vpack.c.b16 %v2541, %v2540
  %v2554 = vpack.c.b16 %v2543, %v2542
  %v2555 = vpack.c.b16 %v2545, %v2544
  %v2556 = vpack.c.b16 %v2547, %v2546
  %v2557 = vpack.c.b16 %v2549, %v2548
  %2566 = vmatprep.subr.bf16.mxu0 0
  %2567 = vmatpush1.bf16.msra.mxu0 %v2550
  %2568 = vmatprep.subr.bf16.mxu0 0
  %2569 = vmatpush1.bf16.msra.mxu0 %v2551
  %2570 = vmatprep.subr.bf16.mxu0 0
  %2571 = vmatpush1.bf16.msra.mxu0 %v2552
  %2572 = vmatprep.subr.bf16.mxu0 0
  %2573 = vmatpush1.bf16.msra.mxu0 %v2553
  %2574 = vmatprep.subr.bf16.mxu0 0
  %2575 = vmatpush1.bf16.msra.mxu0 %v2554
  %2576 = vmatprep.subr.bf16.mxu0 0
  %2577 = vmatpush1.bf16.msra.mxu0 %v2555
  %2578 = vmatprep.subr.bf16.mxu0 0
  %2579 = vmatpush1.bf16.msra.mxu0 %v2556
  %2580 = vmatprep.subr.bf16.mxu0 0
  %2581 = vmatpush1.bf16.msra.mxu0 %v2557
  %2582 = vmatprep.subr.bf16.mxu0 0
  %2583 = vmatpush1.bf16.msra.mxu0 0
  %2584 = vmatprep.subr.bf16.mxu0 0
  %2585 = vmatpush1.bf16.msra.mxu0 0
  %2586 = vmatprep.subr.bf16.mxu0 0
  %2587 = vmatpush1.bf16.msra.mxu0 0
  %2588 = vmatprep.subr.bf16.mxu0 0
  %2589 = vmatpush1.bf16.msra.mxu0 0
  %2590 = vmatprep.subr.bf16.mxu0 0
  %2591 = vmatpush1.bf16.msra.mxu0 0
  %2592 = vmatprep.subr.bf16.mxu0 0
  %2593 = vmatpush1.bf16.msra.mxu0 0
  %2594 = vmatprep.subr.bf16.mxu0 0
  %2595 = vmatpush1.bf16.msra.mxu0 0
  %2596 = vmatprep.subr.bf16.mxu0 0
  %2597 = vmatpush1.bf16.msra.mxu0 0
  %2598 = vmatprep.mubr.bf16.mxu0 0
  %2599 = vmatmul.mubr.bf16.gmra.mrb[0].mxu0 %v2494
  %v2600 = vpop.f32.mrb[0].mxu0
  %v2601 = vadd.f32 %v2516, %v2600
  %v2602 = vpop.f32.mrb[0].mxu0
  %v2603 = vpop.f32.mrb[0].mxu0
  %v2604 = vpop.f32.mrb[0].mxu0
  %2605 = vdwg.mxu0
  %2606 = vst [vmem:[%s12] sm:$0x3] %v2601
  // Predicated region
  $region50: #{_lambda_.1} parent=0 // pred_check
    _
  $region51: #{_lambda_.1} parent=0 // pred_check_branch
    %2608 = sbr.rel (0) target = $region53
  $region52: #{_lambda_.1} parent=0 // pred_region
    _
  $region53: #{_lambda_.1} parent=0 // pred_fallthru
    _
  // Predicated region
  $region54: #{_lambda_.1} parent=0 // pred_check
    _
  $region55: #{_lambda_.1} parent=0 // pred_check_branch
    %2610 = sbr.rel (0) target = $region57
  $region56: #{_lambda_.1} parent=0 // pred_region
    _
  $region57: #{_lambda_.1} parent=0 // pred_fallthru
    _

</llo_original>
